<compile_context>
chip_gen: v7x
topology: tpu7x:2x2x1
jax: 0.10.0
libtpu: 0.0.40
codegen_flags: <defaults>
</compile_context>

<pallas_src>
from typing import NamedTuple, Tuple

import jax
import jax.numpy as jnp
from jax.experimental import pallas as pl
from jax.experimental.pallas import tpu as pltpu

_SUBLANE = 16  # bf16 sublane packing


def _round_up(x, m):
    return ((x + m - 1) // m) * m


def _tpu_info():
    """Coarse, exception-safe generation detection: physical VMEM / TCs per chip / MXU width."""
    kind = ""
    try:
        kind = jax.devices()[0].device_kind.lower()
    except Exception:
        pass
    if "v7" in kind:
        return {"vmem": 64 << 20, "cores": 2, "mxu": 256}
    if "v6" in kind:
        return {"vmem": 128 << 20, "cores": 1, "mxu": 256}
    if "v5" in kind or "v4" in kind:
        return {"vmem": 128 << 20, "cores": 1, "mxu": 128}
    # unknown / older: stay conservative
    return {"vmem": 64 << 20, "cores": 1, "mxu": 128}


# ----------------------------------------------------------------------------- kernel

def _vime_kernel(x_ref,
                 ew0, eb0, ew1, eb1, ew2, eb2, ew3, eb3,
                 hw0, hb0,                 # fused mask/feature head first layer
                 mw1, mb1, fw1, fb1,
                 out_ref):
    f32 = jnp.float32
    bf16 = jnp.bfloat16

    def dense(h, w_ref, b_ref):
        # bf16 operands -> f32 accumulation on the MXU, f32 bias add on the VPU.
        return jnp.dot(h, w_ref[...], preferred_element_type=f32) + b_ref[...]

    # ---- encoder MLP (4 linear layers, ReLU between; torch.relu after) ----
    h = x_ref[...]                                             # (bb, Dp) bf16
    h = jnp.maximum(dense(h, ew0, eb0), 0.0).astype(bf16)
    h = jnp.maximum(dense(h, ew1, eb1), 0.0).astype(bf16)
    h = jnp.maximum(dense(h, ew2, eb2), 0.0).astype(bf16)
    h = jnp.maximum(dense(h, ew3, eb3), 0.0).astype(bf16)      # final Linear + torch.relu

    # ---- fused head first layers: one (Hp, 2*Hp) matmul ----
    g = jnp.maximum(dense(h, hw0, hb0), 0.0).astype(bf16)      # (bb, 2*Hp)
    Hp = hw0.shape[0]
    m_h = g[:, :Hp]
    f_h = g[:, Hp:]

    # ---- head second layers -> single lane-dense bf16 output slab ----
    # TODO(synk): for Dp <= 128 on 256-wide-MXU chips, fuse these two dots into one
    # block-diagonal (2*Hp, 2*Dp) matmul to fill the MXU width.
    Dp = mw1.shape[1]
    m = jax.nn.sigmoid(dense(m_h, mw1, mb1))                   # (bb, Dp) f32
    f = dense(f_h, fw1, fb1)                                   # (bb, Dp) f32
    out_ref[:, :Dp] = m.astype(out_ref.dtype)
    out_ref[:, Dp:] = f.astype(out_ref.dtype)


# ----------------------------------------------------------------------------- params

class PreparedParams(NamedTuple):
    pvals: Tuple[jax.Array, ...]
    D: int
    H: int
    Dp: int
    Hp: int


def prepare_params(params, *, lane_multiple=None):
    """Pad + bf16-cast + concatenate the weights ONCE; reuse across forward calls."""
    D = params["ew0"].shape[0]
    H = params["ew0"].shape[1]
    info = _tpu_info()
    if lane_multiple is None:
        # 256-wide MXU (v6e/v7x): pad to 256 only when the real dims warrant it.
        lane_d = 256 if (info["mxu"] >= 256 and D >= 256) else 128
        lane_h = 256 if (info["mxu"] >= 256 and H >= 256) else 128
    else:
        lane_d = lane_h = lane_multiple
    Dp = _round_up(D, lane_d)
    Hp = _round_up(H, lane_h)

    def pad_w(w, rin, cout):
        w = jnp.asarray(w, jnp.bfloat16)
        return jnp.zeros((rin, cout), jnp.bfloat16).at[:w.shape[0], :w.shape[1]].set(w)

    def pad_b(b, cout):
        b = jnp.asarray(b, jnp.float32).reshape(1, -1)
        return jnp.zeros((1, cout), jnp.float32).at[:, :b.shape[1]].set(b)

    pvals = (
        pad_w(params["ew0"], Dp, Hp), pad_b(params["eb0"], Hp),
        pad_w(params["ew1"], Hp, Hp), pad_b(params["eb1"], Hp),
        pad_w(params["ew2"], Hp, Hp), pad_b(params["eb2"], Hp),
        pad_w(params["ew3"], Hp, Hp), pad_b(params["eb3"], Hp),
        # fused head first layers: (Hp, 2*Hp) weight, (1, 2*Hp) bias
        jnp.concatenate([pad_w(params["mw0"], Hp, Hp), pad_w(params["fw0"], Hp, Hp)], axis=1),
        jnp.concatenate([pad_b(params["mb0"], Hp), pad_b(params["fb0"], Hp)], axis=1),
        pad_w(params["mw1"], Hp, Dp), pad_b(params["mb1"], Dp),
        pad_w(params["fw1"], Hp, Dp), pad_b(params["fb1"], Dp),
    )
    try:
        jax.block_until_ready(pvals)   # materialize once (skip if tracing)
    except Exception:
        pass
    return PreparedParams(pvals, D, H, Dp, Hp)


# ----------------------------------------------------------------------------- sizing

def _choose_block_b(B, Hp, Dp, info):
    if B <= _SUBLANE:
        # TODO(synk): on dual-TC v7x a single <=16-row tile leaves one TensorCore idle;
        # splitting the head/encoder N dimension across 2 grid steps would recover it.
        return _round_up(max(B, 1), _SUBLANE)
    cores = max(1, info["cores"])
    # Enough grid steps that each core still double-buffers its x/out DMAs.
    target_steps = 4 if cores >= 2 else 2
    # Working-set-aware cap: smaller tiles on 64 MiB-VMEM chips when dims are big,
    # up to 1024 rows on 128 MiB v5e/v6e.
    if info["vmem"] <= (64 << 20):
        cap = 256 if max(Hp, Dp) >= 512 else 512
    else:
        cap = 1024
    bb = _round_up(pl.cdiv(B, target_steps), _SUBLANE)
    return max(_SUBLANE, min(cap, bb))


def _vmem_limit_bytes(weight_bytes, block_b, Dp, Hp, x_itemsize, out_itemsize, info):
    in_bytes = 2 * block_b * Dp * x_itemsize             # double-buffered x tile
    out_bytes = 2 * block_b * (2 * Dp) * out_itemsize    # double-buffered output slab
    act_bytes = 6 * block_b * 2 * max(Hp, Dp) * 4        # generous f32 intermediates
    need = weight_bytes + in_bytes + out_bytes + act_bytes + (4 << 20)
    return int(min(max(need, 32 << 20), int(info["vmem"] * 0.9)))


# ----------------------------------------------------------------------------- forward

def vime_self_forward(x, params, *, block_b=None, out_slab_dtype=jnp.bfloat16):
    """Fused VIME self-supervised forward pass.

    x:      (B, input_dim) float-like
    params: raw dict of weights/biases OR a PreparedParams (preferred: prepare once).
    returns (mask, feature), each (B, input_dim) float32
    """
    prepared = params if isinstance(params, PreparedParams) else prepare_params(params)
    pvals, D, H, Dp, Hp = prepared

    B = x.shape[0]
    info = _tpu_info()
    if block_b is None:
        block_b = _choose_block_b(B, Hp, Dp, info)
    block_b = _round_up(block_b, _SUBLANE)
    Bp = _round_up(B, block_b)

    xb = jnp.asarray(x, jnp.bfloat16)
    if B == Bp and D == Dp:
        xp = xb                                             # no padded copy of x needed
    else:
        xp = jnp.zeros((Bp, Dp), jnp.bfloat16).at[:B, :D].set(xb)

    grid = (Bp // block_b,)
    out_shape = jax.ShapeDtypeStruct((Bp, 2 * Dp), out_slab_dtype)

    weight_bytes = sum(int(p.size) * p.dtype.itemsize for p in pvals)
    vmem_limit = _vmem_limit_bytes(weight_bytes, block_b, Dp, Hp,
                                   2, jnp.dtype(out_slab_dtype).itemsize, info)

    def build(single_buffer_weights):
        def full_spec(arr):
            if single_buffer_weights:
                # Grid-invariant weights: single-buffer so they occupy 1x (not 2x) VMEM.
                return pl.BlockSpec(arr.shape, lambda i: (0, 0),
                                    pipeline_mode=pl.Buffered(1))
            return pl.BlockSpec(arr.shape, lambda i: (0, 0))

        in_specs = [pl.BlockSpec((block_b, Dp), lambda i: (i, 0))]
        in_specs += [full_spec(p) for p in pvals]
        out_specs = pl.BlockSpec((block_b, 2 * Dp), lambda i: (i, 0))
        return pl.pallas_call(
            _vime_kernel,
            out_shape=out_shape,
            grid_spec=pltpu.PrefetchScalarGridSpec(
                num_scalar_prefetch=0,
                grid=grid,
                in_specs=in_specs,
                out_specs=out_specs,
            ),
            compiler_params=pltpu.CompilerParams(
                dimension_semantics=("parallel",),
                vmem_limit_bytes=vmem_limit,
            ),
        )

    try:
        out = build(True)(xp, *pvals)
    except Exception:
        # Fallback for JAX versions rejecting Buffered(1) on whole-array blocks.
        out = build(False)(xp, *pvals)

    # Return f32 (module semantics); the cast fuses with the padding-removal slice.
    mask = out[:B, :D].astype(jnp.float32)
    feature = out[:B, Dp:Dp + D].astype(jnp.float32)
    return mask, feature


# ----------------------------------------------------------------------------- test

def init_params(key, input_dim, hidden_dim):
    """Deterministic synthetic parameters (PyTorch Linear-style uniform init)."""
    def linear(key, fan_in, fan_out):
        kw, kb = jax.random.split(key)
        bound = 1.0 / jnp.sqrt(float(fan_in))
        w = jax.random.uniform(kw, (fan_in, fan_out), jnp.float32, -bound, bound)
        b = jax.random.uniform(kb, (1, fan_out), jnp.float32, -bound, bound)
        return w, b

    keys = jax.random.split(key, 8)
    params = {}
    params["ew0"], params["eb0"] = linear(keys[0], input_dim, hidden_dim)
    params["ew1"], params["eb1"] = linear(keys[1], hidden_dim, hidden_dim)
    params["ew2"], params["eb2"] = linear(keys[2], hidden_dim, hidden_dim)
    params["ew3"], params["eb3"] = linear(keys[3], hidden_dim, hidden_dim)
    params["mw0"], params["mb0"] = linear(keys[4], hidden_dim, hidden_dim)
    params["mw1"], params["mb1"] = linear(keys[5], hidden_dim, input_dim)
    params["fw0"], params["fb0"] = linear(keys[6], hidden_dim, hidden_dim)
    params["fw1"], params["fb1"] = linear(keys[7], hidden_dim, input_dim)
    return params


def _reference(x, p):
    """Pure-JAX f32 reference for correctness checking."""
    h = x
    h = jnp.maximum(h @ p["ew0"] + p["eb0"], 0.0)
    h = jnp.maximum(h @ p["ew1"] + p["eb1"], 0.0)
    h = jnp.maximum(h @ p["ew2"] + p["eb2"], 0.0)
    h = h @ p["ew3"] + p["eb3"]
    h = jnp.maximum(h, 0.0)
    m = jnp.maximum(h @ p["mw0"] + p["mb0"], 0.0)
    m = jax.nn.sigmoid(m @ p["mw1"] + p["mb1"])
    f = jnp.maximum(h @ p["fw0"] + p["fb0"], 0.0)
    f = f @ p["fw1"] + p["fb1"]
    return m, f


if __name__ == "__main__":
    input_dim = 16
    hidden_dim = 32
    batch = 8

    key = jax.random.PRNGKey(0)
    kx, kp = jax.random.split(key)
    x = jax.random.normal(kx, (batch, input_dim), jnp.float32)
    raw_params = init_params(kp, input_dim, hidden_dim)

    prepared = prepare_params(raw_params)      # pad + bf16-cast once, reuse across calls
    mask, feature = vime_self_forward(x, prepared)
    jax.block_until_ready((mask, feature))

    m_ref, f_ref = _reference(x, raw_params)
    assert mask.shape == (batch, input_dim) and feature.shape == (batch, input_dim)
    # bf16 matmul operands + bf16 output slab, f32 accumulation -> small bounded error
    assert jnp.allclose(mask, m_ref, atol=4e-2, rtol=4e-2)
    assert jnp.allclose(feature, f_ref, atol=4e-2, rtol=4e-2)

    print("KERNEL_OK")
</pallas_src>

<mosaic_0001>
module attributes {stable_mosaic.version = 11 : i64} {
  func.func @_vime_kernel(%arg0: i32, %arg1: memref<16x128xbf16, #tpu.memory_space<vmem>>, %arg2: memref<128x128xbf16, #tpu.memory_space<vmem>>, %arg3: memref<1x128xf32, #tpu.memory_space<vmem>>, %arg4: memref<128x128xbf16, #tpu.memory_space<vmem>>, %arg5: memref<1x128xf32, #tpu.memory_space<vmem>>, %arg6: memref<128x128xbf16, #tpu.memory_space<vmem>>, %arg7: memref<1x128xf32, #tpu.memory_space<vmem>>, %arg8: memref<128x128xbf16, #tpu.memory_space<vmem>>, %arg9: memref<1x128xf32, #tpu.memory_space<vmem>>, %arg10: memref<128x256xbf16, #tpu.memory_space<vmem>>, %arg11: memref<1x256xf32, #tpu.memory_space<vmem>>, %arg12: memref<128x128xbf16, #tpu.memory_space<vmem>>, %arg13: memref<1x128xf32, #tpu.memory_space<vmem>>, %arg14: memref<128x128xbf16, #tpu.memory_space<vmem>>, %arg15: memref<1x128xf32, #tpu.memory_space<vmem>>, %arg16: memref<16x256xbf16, #tpu.memory_space<vmem>>) attributes {dimension_semantics = [#tpu.dimension_semantics<parallel>], iteration_bounds = array<i64: 1>, scalar_prefetch = 0 : i64, scratch_operands = 0 : i64, tpu.core_type = #tpu.core_type<tc>, window_params = [{transform_indices = @transform_0, window_bounds = array<i64: 16, 128>}, {pipeline_mode = #tpu.pipeline_mode<synchronous>, transform_indices = @transform_1, window_bounds = array<i64: 128, 128>}, {pipeline_mode = #tpu.pipeline_mode<synchronous>, transform_indices = @transform_2, window_bounds = array<i64: 1, 128>}, {pipeline_mode = #tpu.pipeline_mode<synchronous>, transform_indices = @transform_3, window_bounds = array<i64: 128, 128>}, {pipeline_mode = #tpu.pipeline_mode<synchronous>, transform_indices = @transform_4, window_bounds = array<i64: 1, 128>}, {pipeline_mode = #tpu.pipeline_mode<synchronous>, transform_indices = @transform_5, window_bounds = array<i64: 128, 128>}, {pipeline_mode = #tpu.pipeline_mode<synchronous>, transform_indices = @transform_6, window_bounds = array<i64: 1, 128>}, {pipeline_mode = #tpu.pipeline_mode<synchronous>, transform_indices = @transform_7, window_bounds = array<i64: 128, 128>}, {pipeline_mode = #tpu.pipeline_mode<synchronous>, transform_indices = @transform_8, window_bounds = array<i64: 1, 128>}, {pipeline_mode = #tpu.pipeline_mode<synchronous>, transform_indices = @transform_9, window_bounds = array<i64: 128, 256>}, {pipeline_mode = #tpu.pipeline_mode<synchronous>, transform_indices = @transform_10, window_bounds = array<i64: 1, 256>}, {pipeline_mode = #tpu.pipeline_mode<synchronous>, transform_indices = @transform_11, window_bounds = array<i64: 128, 128>}, {pipeline_mode = #tpu.pipeline_mode<synchronous>, transform_indices = @transform_12, window_bounds = array<i64: 1, 128>}, {pipeline_mode = #tpu.pipeline_mode<synchronous>, transform_indices = @transform_13, window_bounds = array<i64: 128, 128>}, {pipeline_mode = #tpu.pipeline_mode<synchronous>, transform_indices = @transform_14, window_bounds = array<i64: 1, 128>}, {transform_indices = @transform_15, window_bounds = array<i64: 16, 256>}]} {
    %c0 = arith.constant 0 : index
    %c0_0 = arith.constant 0 : index
    %0 = vector.load %arg1[%c0, %c0_0] : memref<16x128xbf16, #tpu.memory_space<vmem>>, vector<16x128xbf16>
    %c0_1 = arith.constant 0 : index
    %c0_2 = arith.constant 0 : index
    %1 = vector.load %arg2[%c0_1, %c0_2] : memref<128x128xbf16, #tpu.memory_space<vmem>>, vector<128x128xbf16>
    %cst = arith.constant dense<0.000000e+00> : vector<16x128xf32>
    %2 = tpu.matmul %0, %1, %cst {dimension_numbers = #tpu.dot_dimension_numbers<[1], [0], [0], [1], [0, 0, 1, 1], [], []>} : vector<16x128xbf16>, vector<128x128xbf16>, vector<16x128xf32> -> vector<16x128xf32>
    %c0_3 = arith.constant 0 : index
    %c0_4 = arith.constant 0 : index
    %3 = vector.load %arg3[%c0_3, %c0_4] : memref<1x128xf32, #tpu.memory_space<vmem>>, vector<1x128xf32>
    %4 = vector.broadcast %3 : vector<1x128xf32> to vector<16x128xf32>
    %5 = arith.addf %2, %4 : vector<16x128xf32>
    %cst_5 = arith.constant 0.000000e+00 : f32
    %6 = vector.broadcast %cst_5 : f32 to vector<16x128xf32>
    %7 = arith.maximumf %5, %6 : vector<16x128xf32>
    %8 = arith.truncf %7 : vector<16x128xf32> to vector<16x128xbf16>
    %c0_6 = arith.constant 0 : index
    %c0_7 = arith.constant 0 : index
    %9 = vector.load %arg4[%c0_6, %c0_7] : memref<128x128xbf16, #tpu.memory_space<vmem>>, vector<128x128xbf16>
    %cst_8 = arith.constant dense<0.000000e+00> : vector<16x128xf32>
    %10 = tpu.matmul %8, %9, %cst_8 {dimension_numbers = #tpu.dot_dimension_numbers<[1], [0], [0], [1], [0, 0, 1, 1], [], []>} : vector<16x128xbf16>, vector<128x128xbf16>, vector<16x128xf32> -> vector<16x128xf32>
    %c0_9 = arith.constant 0 : index
    %c0_10 = arith.constant 0 : index
    %11 = vector.load %arg5[%c0_9, %c0_10] : memref<1x128xf32, #tpu.memory_space<vmem>>, vector<1x128xf32>
    %12 = vector.broadcast %11 : vector<1x128xf32> to vector<16x128xf32>
    %13 = arith.addf %10, %12 : vector<16x128xf32>
    %cst_11 = arith.constant 0.000000e+00 : f32
    %14 = vector.broadcast %cst_11 : f32 to vector<16x128xf32>
    %15 = arith.maximumf %13, %14 : vector<16x128xf32>
    %16 = arith.truncf %15 : vector<16x128xf32> to vector<16x128xbf16>
    %c0_12 = arith.constant 0 : index
    %c0_13 = arith.constant 0 : index
    %17 = vector.load %arg6[%c0_12, %c0_13] : memref<128x128xbf16, #tpu.memory_space<vmem>>, vector<128x128xbf16>
    %cst_14 = arith.constant dense<0.000000e+00> : vector<16x128xf32>
    %18 = tpu.matmul %16, %17, %cst_14 {dimension_numbers = #tpu.dot_dimension_numbers<[1], [0], [0], [1], [0, 0, 1, 1], [], []>} : vector<16x128xbf16>, vector<128x128xbf16>, vector<16x128xf32> -> vector<16x128xf32>
    %c0_15 = arith.constant 0 : index
    %c0_16 = arith.constant 0 : index
    %19 = vector.load %arg7[%c0_15, %c0_16] : memref<1x128xf32, #tpu.memory_space<vmem>>, vector<1x128xf32>
    %20 = vector.broadcast %19 : vector<1x128xf32> to vector<16x128xf32>
    %21 = arith.addf %18, %20 : vector<16x128xf32>
    %cst_17 = arith.constant 0.000000e+00 : f32
    %22 = vector.broadcast %cst_17 : f32 to vector<16x128xf32>
    %23 = arith.maximumf %21, %22 : vector<16x128xf32>
    %24 = arith.truncf %23 : vector<16x128xf32> to vector<16x128xbf16>
    %c0_18 = arith.constant 0 : index
    %c0_19 = arith.constant 0 : index
    %25 = vector.load %arg8[%c0_18, %c0_19] : memref<128x128xbf16, #tpu.memory_space<vmem>>, vector<128x128xbf16>
    %cst_20 = arith.constant dense<0.000000e+00> : vector<16x128xf32>
    %26 = tpu.matmul %24, %25, %cst_20 {dimension_numbers = #tpu.dot_dimension_numbers<[1], [0], [0], [1], [0, 0, 1, 1], [], []>} : vector<16x128xbf16>, vector<128x128xbf16>, vector<16x128xf32> -> vector<16x128xf32>
    %c0_21 = arith.constant 0 : index
    %c0_22 = arith.constant 0 : index
    %27 = vector.load %arg9[%c0_21, %c0_22] : memref<1x128xf32, #tpu.memory_space<vmem>>, vector<1x128xf32>
    %28 = vector.broadcast %27 : vector<1x128xf32> to vector<16x128xf32>
    %29 = arith.addf %26, %28 : vector<16x128xf32>
    %cst_23 = arith.constant 0.000000e+00 : f32
    %30 = vector.broadcast %cst_23 : f32 to vector<16x128xf32>
    %31 = arith.maximumf %29, %30 : vector<16x128xf32>
    %32 = arith.truncf %31 : vector<16x128xf32> to vector<16x128xbf16>
    %c0_24 = arith.constant 0 : index
    %c0_25 = arith.constant 0 : index
    %33 = vector.load %arg10[%c0_24, %c0_25] : memref<128x256xbf16, #tpu.memory_space<vmem>>, vector<128x256xbf16>
    %cst_26 = arith.constant dense<0.000000e+00> : vector<16x256xf32>
    %34 = tpu.matmul %32, %33, %cst_26 {dimension_numbers = #tpu.dot_dimension_numbers<[1], [0], [0], [1], [0, 0, 1, 1], [], []>} : vector<16x128xbf16>, vector<128x256xbf16>, vector<16x256xf32> -> vector<16x256xf32>
    %c0_27 = arith.constant 0 : index
    %c0_28 = arith.constant 0 : index
    %35 = vector.load %arg11[%c0_27, %c0_28] : memref<1x256xf32, #tpu.memory_space<vmem>>, vector<1x256xf32>
    %36 = vector.broadcast %35 : vector<1x256xf32> to vector<16x256xf32>
    %37 = arith.addf %34, %36 : vector<16x256xf32>
    %cst_29 = arith.constant 0.000000e+00 : f32
    %38 = vector.broadcast %cst_29 : f32 to vector<16x256xf32>
    %39 = arith.maximumf %37, %38 : vector<16x256xf32>
    %40 = arith.truncf %39 : vector<16x256xf32> to vector<16x256xbf16>
    %41 = vector.extract_strided_slice %40 {offsets = [0, 0], sizes = [16, 128], strides = [1, 1]} : vector<16x256xbf16> to vector<16x128xbf16>
    %42 = vector.extract_strided_slice %40 {offsets = [0, 128], sizes = [16, 128], strides = [1, 1]} : vector<16x256xbf16> to vector<16x128xbf16>
    %c0_30 = arith.constant 0 : index
    %c0_31 = arith.constant 0 : index
    %43 = vector.load %arg12[%c0_30, %c0_31] : memref<128x128xbf16, #tpu.memory_space<vmem>>, vector<128x128xbf16>
    %cst_32 = arith.constant dense<0.000000e+00> : vector<16x128xf32>
    %44 = tpu.matmul %41, %43, %cst_32 {dimension_numbers = #tpu.dot_dimension_numbers<[1], [0], [0], [1], [0, 0, 1, 1], [], []>} : vector<16x128xbf16>, vector<128x128xbf16>, vector<16x128xf32> -> vector<16x128xf32>
    %c0_33 = arith.constant 0 : index
    %c0_34 = arith.constant 0 : index
    %45 = vector.load %arg13[%c0_33, %c0_34] : memref<1x128xf32, #tpu.memory_space<vmem>>, vector<1x128xf32>
    %46 = vector.broadcast %45 : vector<1x128xf32> to vector<16x128xf32>
    %47 = arith.addf %44, %46 : vector<16x128xf32>
    %48 = arith.negf %47 : vector<16x128xf32>
    %49 = math.exp %48 : vector<16x128xf32>
    %cst_35 = arith.constant 1.000000e+00 : f32
    %50 = vector.broadcast %cst_35 : f32 to vector<16x128xf32>
    %51 = arith.addf %50, %49 : vector<16x128xf32>
    %52 = arith.divf %50, %51 : vector<16x128xf32>
    %c0_36 = arith.constant 0 : index
    %c0_37 = arith.constant 0 : index
    %53 = vector.load %arg14[%c0_36, %c0_37] : memref<128x128xbf16, #tpu.memory_space<vmem>>, vector<128x128xbf16>
    %cst_38 = arith.constant dense<0.000000e+00> : vector<16x128xf32>
    %54 = tpu.matmul %42, %53, %cst_38 {dimension_numbers = #tpu.dot_dimension_numbers<[1], [0], [0], [1], [0, 0, 1, 1], [], []>} : vector<16x128xbf16>, vector<128x128xbf16>, vector<16x128xf32> -> vector<16x128xf32>
    %c0_39 = arith.constant 0 : index
    %c0_40 = arith.constant 0 : index
    %55 = vector.load %arg15[%c0_39, %c0_40] : memref<1x128xf32, #tpu.memory_space<vmem>>, vector<1x128xf32>
    %56 = vector.broadcast %55 : vector<1x128xf32> to vector<16x128xf32>
    %57 = arith.addf %54, %56 : vector<16x128xf32>
    %58 = arith.truncf %52 : vector<16x128xf32> to vector<16x128xbf16>
    %c0_41 = arith.constant 0 : index
    %c0_42 = arith.constant 0 : index
    %59 = vector.load %arg16[%c0_41, %c0_42] : memref<16x256xbf16, #tpu.memory_space<vmem>>, vector<16x128xbf16>
    tpu.vector_store %arg16[%c0_41, %c0_42], %58 {strides = array<i32>} : memref<16x256xbf16, #tpu.memory_space<vmem>>, vector<16x128xbf16>,
    %60 = arith.truncf %57 : vector<16x128xf32> to vector<16x128xbf16>
    %c0_43 = arith.constant 0 : index
    %c128 = arith.constant 128 : index
    %61 = vector.load %arg16[%c0_43, %c128] : memref<16x256xbf16, #tpu.memory_space<vmem>>, vector<16x128xbf16>
    tpu.vector_store %arg16[%c0_43, %c128], %60 {strides = array<i32>} : memref<16x256xbf16, #tpu.memory_space<vmem>>, vector<16x128xbf16>,
    return
  }
  func.func @transform_0(%arg0: i32) -> (i32, i32) {
    %c0_i32 = arith.constant 0 : i32
    %c0_i32_0 = arith.constant 0 : i32
    return %arg0, %c0_i32 : i32, i32
  }
  func.func @transform_1(%arg0: i32) -> (i32, i32) {
    %c0_i32 = arith.constant 0 : i32
    %c0_i32_0 = arith.constant 0 : i32
    %c0_i32_1 = arith.constant 0 : i32
    return %c0_i32, %c0_i32_0 : i32, i32
  }
  func.func @transform_2(%arg0: i32) -> (i32, i32) {
    %c0_i32 = arith.constant 0 : i32
    %c0_i32_0 = arith.constant 0 : i32
    %c0_i32_1 = arith.constant 0 : i32
    return %c0_i32, %c0_i32_0 : i32, i32
  }
  func.func @transform_3(%arg0: i32) -> (i32, i32) {
    %c0_i32 = arith.constant 0 : i32
    %c0_i32_0 = arith.constant 0 : i32
    %c0_i32_1 = arith.constant 0 : i32
    return %c0_i32, %c0_i32_0 : i32, i32
  }
  func.func @transform_4(%arg0: i32) -> (i32, i32) {
    %c0_i32 = arith.constant 0 : i32
    %c0_i32_0 = arith.constant 0 : i32
    %c0_i32_1 = arith.constant 0 : i32
    return %c0_i32, %c0_i32_0 : i32, i32
  }
  func.func @transform_5(%arg0: i32) -> (i32, i32) {
    %c0_i32 = arith.constant 0 : i32
    %c0_i32_0 = arith.constant 0 : i32
    %c0_i32_1 = arith.constant 0 : i32
    return %c0_i32, %c0_i32_0 : i32, i32
  }
  func.func @transform_6(%arg0: i32) -> (i32, i32) {
    %c0_i32 = arith.constant 0 : i32
    %c0_i32_0 = arith.constant 0 : i32
    %c0_i32_1 = arith.constant 0 : i32
    return %c0_i32, %c0_i32_0 : i32, i32
  }
  func.func @transform_7(%arg0: i32) -> (i32, i32) {
    %c0_i32 = arith.constant 0 : i32
    %c0_i32_0 = arith.constant 0 : i32
    %c0_i32_1 = arith.constant 0 : i32
    return %c0_i32, %c0_i32_0 : i32, i32
  }
  func.func @transform_8(%arg0: i32) -> (i32, i32) {
    %c0_i32 = arith.constant 0 : i32
    %c0_i32_0 = arith.constant 0 : i32
    %c0_i32_1 = arith.constant 0 : i32
    return %c0_i32, %c0_i32_0 : i32, i32
  }
  func.func @transform_9(%arg0: i32) -> (i32, i32) {
    %c0_i32 = arith.constant 0 : i32
    %c0_i32_0 = arith.constant 0 : i32
    %c0_i32_1 = arith.constant 0 : i32
    return %c0_i32, %c0_i32_0 : i32, i32
  }
  func.func @transform_10(%arg0: i32) -> (i32, i32) {
    %c0_i32 = arith.constant 0 : i32
    %c0_i32_0 = arith.constant 0 : i32
    %c0_i32_1 = arith.constant 0 : i32
    return %c0_i32, %c0_i32_0 : i32, i32
  }
  func.func @transform_11(%arg0: i32) -> (i32, i32) {
    %c0_i32 = arith.constant 0 : i32
    %c0_i32_0 = arith.constant 0 : i32
    %c0_i32_1 = arith.constant 0 : i32
    return %c0_i32, %c0_i32_0 : i32, i32
  }
  func.func @transform_12(%arg0: i32) -> (i32, i32) {
    %c0_i32 = arith.constant 0 : i32
    %c0_i32_0 = arith.constant 0 : i32
    %c0_i32_1 = arith.constant 0 : i32
    return %c0_i32, %c0_i32_0 : i32, i32
  }
  func.func @transform_13(%arg0: i32) -> (i32, i32) {
    %c0_i32 = arith.constant 0 : i32
    %c0_i32_0 = arith.constant 0 : i32
    %c0_i32_1 = arith.constant 0 : i32
    return %c0_i32, %c0_i32_0 : i32, i32
  }
  func.func @transform_14(%arg0: i32) -> (i32, i32) {
    %c0_i32 = arith.constant 0 : i32
    %c0_i32_0 = arith.constant 0 : i32
    %c0_i32_1 = arith.constant 0 : i32
    return %c0_i32, %c0_i32_0 : i32, i32
  }
  func.func @transform_15(%arg0: i32) -> (i32, i32) {
    %c0_i32 = arith.constant 0 : i32
    %c0_i32_0 = arith.constant 0 : i32
    return %arg0, %c0_i32 : i32, i32
  }
}

module attributes {stable_mosaic.version = 11 : i64} {
  func.func @_vime_kernel(%arg0: i32, %arg1: memref<16x128xbf16, #tpu.memory_space<vmem>>, %arg2: memref<128x128xbf16, #tpu.memory_space<vmem>>, %arg3: memref<1x128xf32, #tpu.memory_space<vmem>>, %arg4: memref<128x128xbf16, #tpu.memory_space<vmem>>, %arg5: memref<1x128xf32, #tpu.memory_space<vmem>>, %arg6: memref<128x128xbf16, #tpu.memory_space<vmem>>, %arg7: memref<1x128xf32, #tpu.memory_space<vmem>>, %arg8: memref<128x128xbf16, #tpu.memory_space<vmem>>, %arg9: memref<1x128xf32, #tpu.memory_space<vmem>>, %arg10: memref<128x256xbf16, #tpu.memory_space<vmem>>, %arg11: memref<1x256xf32, #tpu.memory_space<vmem>>, %arg12: memref<128x128xbf16, #tpu.memory_space<vmem>>, %arg13: memref<1x128xf32, #tpu.memory_space<vmem>>, %arg14: memref<128x128xbf16, #tpu.memory_space<vmem>>, %arg15: memref<1x128xf32, #tpu.memory_space<vmem>>, %arg16: memref<16x256xbf16, #tpu.memory_space<vmem>>) attributes {dimension_semantics = [#tpu.dimension_semantics<parallel>], iteration_bounds = array<i64: 1>, scalar_prefetch = 0 : i64, scratch_operands = 0 : i64, tpu.core_type = #tpu.core_type<tc>, window_params = [{transform_indices = @transform_0, window_bounds = array<i64: 16, 128>}, {pipeline_mode = #tpu.pipeline_mode<synchronous>, transform_indices = @transform_1, window_bounds = array<i64: 128, 128>}, {pipeline_mode = #tpu.pipeline_mode<synchronous>, transform_indices = @transform_2, window_bounds = array<i64: 1, 128>}, {pipeline_mode = #tpu.pipeline_mode<synchronous>, transform_indices = @transform_3, window_bounds = array<i64: 128, 128>}, {pipeline_mode = #tpu.pipeline_mode<synchronous>, transform_indices = @transform_4, window_bounds = array<i64: 1, 128>}, {pipeline_mode = #tpu.pipeline_mode<synchronous>, transform_indices = @transform_5, window_bounds = array<i64: 128, 128>}, {pipeline_mode = #tpu.pipeline_mode<synchronous>, transform_indices = @transform_6, window_bounds = array<i64: 1, 128>}, {pipeline_mode = #tpu.pipeline_mode<synchronous>, transform_indices = @transform_7, window_bounds = array<i64: 128, 128>}, {pipeline_mode = #tpu.pipeline_mode<synchronous>, transform_indices = @transform_8, window_bounds = array<i64: 1, 128>}, {pipeline_mode = #tpu.pipeline_mode<synchronous>, transform_indices = @transform_9, window_bounds = array<i64: 128, 256>}, {pipeline_mode = #tpu.pipeline_mode<synchronous>, transform_indices = @transform_10, window_bounds = array<i64: 1, 256>}, {pipeline_mode = #tpu.pipeline_mode<synchronous>, transform_indices = @transform_11, window_bounds = array<i64: 128, 128>}, {pipeline_mode = #tpu.pipeline_mode<synchronous>, transform_indices = @transform_12, window_bounds = array<i64: 1, 128>}, {pipeline_mode = #tpu.pipeline_mode<synchronous>, transform_indices = @transform_13, window_bounds = array<i64: 128, 128>}, {pipeline_mode = #tpu.pipeline_mode<synchronous>, transform_indices = @transform_14, window_bounds = array<i64: 1, 128>}, {transform_indices = @transform_15, window_bounds = array<i64: 16, 256>}]} {
    %c0 = arith.constant 0 : index
    %c0_0 = arith.constant 0 : index
    %0 = vector.load %arg1[%c0, %c0_0] : memref<16x128xbf16, #tpu.memory_space<vmem>>, vector<16x128xbf16>
    %c0_1 = arith.constant 0 : index
    %c0_2 = arith.constant 0 : index
    %1 = vector.load %arg2[%c0_1, %c0_2] : memref<128x128xbf16, #tpu.memory_space<vmem>>, vector<128x128xbf16>
    %cst = arith.constant dense<0.000000e+00> : vector<16x128xf32>
    %2 = tpu.matmul %0, %1, %cst {dimension_numbers = #tpu.dot_dimension_numbers<[1], [0], [0], [1], [0, 0, 1, 1], [], []>} : vector<16x128xbf16>, vector<128x128xbf16>, vector<16x128xf32> -> vector<16x128xf32>
    %c0_3 = arith.constant 0 : index
    %c0_4 = arith.constant 0 : index
    %3 = vector.load %arg3[%c0_3, %c0_4] : memref<1x128xf32, #tpu.memory_space<vmem>>, vector<1x128xf32>
    %4 = vector.broadcast %3 : vector<1x128xf32> to vector<16x128xf32>
    %5 = arith.addf %2, %4 : vector<16x128xf32>
    %cst_5 = arith.constant 0.000000e+00 : f32
    %6 = vector.broadcast %cst_5 : f32 to vector<16x128xf32>
    %7 = arith.maximumf %5, %6 : vector<16x128xf32>
    %8 = arith.truncf %7 : vector<16x128xf32> to vector<16x128xbf16>
    %c0_6 = arith.constant 0 : index
    %c0_7 = arith.constant 0 : index
    %9 = vector.load %arg4[%c0_6, %c0_7] : memref<128x128xbf16, #tpu.memory_space<vmem>>, vector<128x128xbf16>
    %cst_8 = arith.constant dense<0.000000e+00> : vector<16x128xf32>
    %10 = tpu.matmul %8, %9, %cst_8 {dimension_numbers = #tpu.dot_dimension_numbers<[1], [0], [0], [1], [0, 0, 1, 1], [], []>} : vector<16x128xbf16>, vector<128x128xbf16>, vector<16x128xf32> -> vector<16x128xf32>
    %c0_9 = arith.constant 0 : index
    %c0_10 = arith.constant 0 : index
    %11 = vector.load %arg5[%c0_9, %c0_10] : memref<1x128xf32, #tpu.memory_space<vmem>>, vector<1x128xf32>
    %12 = vector.broadcast %11 : vector<1x128xf32> to vector<16x128xf32>
    %13 = arith.addf %10, %12 : vector<16x128xf32>
    %cst_11 = arith.constant 0.000000e+00 : f32
    %14 = vector.broadcast %cst_11 : f32 to vector<16x128xf32>
    %15 = arith.maximumf %13, %14 : vector<16x128xf32>
    %16 = arith.truncf %15 : vector<16x128xf32> to vector<16x128xbf16>
    %c0_12 = arith.constant 0 : index
    %c0_13 = arith.constant 0 : index
    %17 = vector.load %arg6[%c0_12, %c0_13] : memref<128x128xbf16, #tpu.memory_space<vmem>>, vector<128x128xbf16>
    %cst_14 = arith.constant dense<0.000000e+00> : vector<16x128xf32>
    %18 = tpu.matmul %16, %17, %cst_14 {dimension_numbers = #tpu.dot_dimension_numbers<[1], [0], [0], [1], [0, 0, 1, 1], [], []>} : vector<16x128xbf16>, vector<128x128xbf16>, vector<16x128xf32> -> vector<16x128xf32>
    %c0_15 = arith.constant 0 : index
    %c0_16 = arith.constant 0 : index
    %19 = vector.load %arg7[%c0_15, %c0_16] : memref<1x128xf32, #tpu.memory_space<vmem>>, vector<1x128xf32>
    %20 = vector.broadcast %19 : vector<1x128xf32> to vector<16x128xf32>
    %21 = arith.addf %18, %20 : vector<16x128xf32>
    %cst_17 = arith.constant 0.000000e+00 : f32
    %22 = vector.broadcast %cst_17 : f32 to vector<16x128xf32>
    %23 = arith.maximumf %21, %22 : vector<16x128xf32>
    %24 = arith.truncf %23 : vector<16x128xf32> to vector<16x128xbf16>
    %c0_18 = arith.constant 0 : index
    %c0_19 = arith.constant 0 : index
    %25 = vector.load %arg8[%c0_18, %c0_19] : memref<128x128xbf16, #tpu.memory_space<vmem>>, vector<128x128xbf16>
    %cst_20 = arith.constant dense<0.000000e+00> : vector<16x128xf32>
    %26 = tpu.matmul %24, %25, %cst_20 {dimension_numbers = #tpu.dot_dimension_numbers<[1], [0], [0], [1], [0, 0, 1, 1], [], []>} : vector<16x128xbf16>, vector<128x128xbf16>, vector<16x128xf32> -> vector<16x128xf32>
    %c0_21 = arith.constant 0 : index
    %c0_22 = arith.constant 0 : index
    %27 = vector.load %arg9[%c0_21, %c0_22] : memref<1x128xf32, #tpu.memory_space<vmem>>, vector<1x128xf32>
    %28 = vector.broadcast %27 : vector<1x128xf32> to vector<16x128xf32>
    %29 = arith.addf %26, %28 : vector<16x128xf32>
    %cst_23 = arith.constant 0.000000e+00 : f32
    %30 = vector.broadcast %cst_23 : f32 to vector<16x128xf32>
    %31 = arith.maximumf %29, %30 : vector<16x128xf32>
    %32 = arith.truncf %31 : vector<16x128xf32> to vector<16x128xbf16>
    %c0_24 = arith.constant 0 : index
    %c0_25 = arith.constant 0 : index
    %33 = vector.load %arg10[%c0_24, %c0_25] : memref<128x256xbf16, #tpu.memory_space<vmem>>, vector<128x256xbf16>
    %cst_26 = arith.constant dense<0.000000e+00> : vector<16x256xf32>
    %34 = tpu.matmul %32, %33, %cst_26 {dimension_numbers = #tpu.dot_dimension_numbers<[1], [0], [0], [1], [0, 0, 1, 1], [], []>} : vector<16x128xbf16>, vector<128x256xbf16>, vector<16x256xf32> -> vector<16x256xf32>
    %c0_27 = arith.constant 0 : index
    %c0_28 = arith.constant 0 : index
    %35 = vector.load %arg11[%c0_27, %c0_28] : memref<1x256xf32, #tpu.memory_space<vmem>>, vector<1x256xf32>
    %36 = vector.broadcast %35 : vector<1x256xf32> to vector<16x256xf32>
    %37 = arith.addf %34, %36 : vector<16x256xf32>
    %cst_29 = arith.constant 0.000000e+00 : f32
    %38 = vector.broadcast %cst_29 : f32 to vector<16x256xf32>
    %39 = arith.maximumf %37, %38 : vector<16x256xf32>
    %40 = arith.truncf %39 : vector<16x256xf32> to vector<16x256xbf16>
    %41 = vector.extract_strided_slice %40 {offsets = [0, 0], sizes = [16, 128], strides = [1, 1]} : vector<16x256xbf16> to vector<16x128xbf16>
    %42 = vector.extract_strided_slice %40 {offsets = [0, 128], sizes = [16, 128], strides = [1, 1]} : vector<16x256xbf16> to vector<16x128xbf16>
    %c0_30 = arith.constant 0 : index
    %c0_31 = arith.constant 0 : index
    %43 = vector.load %arg12[%c0_30, %c0_31] : memref<128x128xbf16, #tpu.memory_space<vmem>>, vector<128x128xbf16>
    %cst_32 = arith.constant dense<0.000000e+00> : vector<16x128xf32>
    %44 = tpu.matmul %41, %43, %cst_32 {dimension_numbers = #tpu.dot_dimension_numbers<[1], [0], [0], [1], [0, 0, 1, 1], [], []>} : vector<16x128xbf16>, vector<128x128xbf16>, vector<16x128xf32> -> vector<16x128xf32>
    %c0_33 = arith.constant 0 : index
    %c0_34 = arith.constant 0 : index
    %45 = vector.load %arg13[%c0_33, %c0_34] : memref<1x128xf32, #tpu.memory_space<vmem>>, vector<1x128xf32>
    %46 = vector.broadcast %45 : vector<1x128xf32> to vector<16x128xf32>
    %47 = arith.addf %44, %46 : vector<16x128xf32>
    %48 = arith.negf %47 : vector<16x128xf32>
    %49 = math.exp %48 : vector<16x128xf32>
    %cst_35 = arith.constant 1.000000e+00 : f32
    %50 = vector.broadcast %cst_35 : f32 to vector<16x128xf32>
    %51 = arith.addf %50, %49 : vector<16x128xf32>
    %52 = arith.divf %50, %51 : vector<16x128xf32>
    %c0_36 = arith.constant 0 : index
    %c0_37 = arith.constant 0 : index
    %53 = vector.load %arg14[%c0_36, %c0_37] : memref<128x128xbf16, #tpu.memory_space<vmem>>, vector<128x128xbf16>
    %cst_38 = arith.constant dense<0.000000e+00> : vector<16x128xf32>
    %54 = tpu.matmul %42, %53, %cst_38 {dimension_numbers = #tpu.dot_dimension_numbers<[1], [0], [0], [1], [0, 0, 1, 1], [], []>} : vector<16x128xbf16>, vector<128x128xbf16>, vector<16x128xf32> -> vector<16x128xf32>
    %c0_39 = arith.constant 0 : index
    %c0_40 = arith.constant 0 : index
    %55 = vector.load %arg15[%c0_39, %c0_40] : memref<1x128xf32, #tpu.memory_space<vmem>>, vector<1x128xf32>
    %56 = vector.broadcast %55 : vector<1x128xf32> to vector<16x128xf32>
    %57 = arith.addf %54, %56 : vector<16x128xf32>
    %58 = arith.truncf %52 : vector<16x128xf32> to vector<16x128xbf16>
    %c0_41 = arith.constant 0 : index
    %c0_42 = arith.constant 0 : index
    %59 = vector.load %arg16[%c0_41, %c0_42] : memref<16x256xbf16, #tpu.memory_space<vmem>>, vector<16x128xbf16>
    tpu.vector_store %arg16[%c0_41, %c0_42], %58 {strides = array<i32>} : memref<16x256xbf16, #tpu.memory_space<vmem>>, vector<16x128xbf16>,
    %60 = arith.truncf %57 : vector<16x128xf32> to vector<16x128xbf16>
    %c0_43 = arith.constant 0 : index
    %c128 = arith.constant 128 : index
    %61 = vector.load %arg16[%c0_43, %c128] : memref<16x256xbf16, #tpu.memory_space<vmem>>, vector<16x128xbf16>
    tpu.vector_store %arg16[%c0_43, %c128], %60 {strides = array<i32>} : memref<16x256xbf16, #tpu.memory_space<vmem>>, vector<16x128xbf16>,
    return
  }
  func.func @transform_0(%arg0: i32) -> (i32, i32) {
    %c0_i32 = arith.constant 0 : i32
    %c0_i32_0 = arith.constant 0 : i32
    return %arg0, %c0_i32 : i32, i32
  }
  func.func @transform_1(%arg0: i32) -> (i32, i32) {
    %c0_i32 = arith.constant 0 : i32
    %c0_i32_0 = arith.constant 0 : i32
    %c0_i32_1 = arith.constant 0 : i32
    return %c0_i32, %c0_i32_0 : i32, i32
  }
  func.func @transform_2(%arg0: i32) -> (i32, i32) {
    %c0_i32 = arith.constant 0 : i32
    %c0_i32_0 = arith.constant 0 : i32
    %c0_i32_1 = arith.constant 0 : i32
    return %c0_i32, %c0_i32_0 : i32, i32
  }
  func.func @transform_3(%arg0: i32) -> (i32, i32) {
    %c0_i32 = arith.constant 0 : i32
    %c0_i32_0 = arith.constant 0 : i32
    %c0_i32_1 = arith.constant 0 : i32
    return %c0_i32, %c0_i32_0 : i32, i32
  }
  func.func @transform_4(%arg0: i32) -> (i32, i32) {
    %c0_i32 = arith.constant 0 : i32
    %c0_i32_0 = arith.constant 0 : i32
    %c0_i32_1 = arith.constant 0 : i32
    return %c0_i32, %c0_i32_0 : i32, i32
  }
  func.func @transform_5(%arg0: i32) -> (i32, i32) {
    %c0_i32 = arith.constant 0 : i32
    %c0_i32_0 = arith.constant 0 : i32
    %c0_i32_1 = arith.constant 0 : i32
    return %c0_i32, %c0_i32_0 : i32, i32
  }
  func.func @transform_6(%arg0: i32) -> (i32, i32) {
    %c0_i32 = arith.constant 0 : i32
    %c0_i32_0 = arith.constant 0 : i32
    %c0_i32_1 = arith.constant 0 : i32
    return %c0_i32, %c0_i32_0 : i32, i32
  }
  func.func @transform_7(%arg0: i32) -> (i32, i32) {
    %c0_i32 = arith.constant 0 : i32
    %c0_i32_0 = arith.constant 0 : i32
    %c0_i32_1 = arith.constant 0 : i32
    return %c0_i32, %c0_i32_0 : i32, i32
  }
  func.func @transform_8(%arg0: i32) -> (i32, i32) {
    %c0_i32 = arith.constant 0 : i32
    %c0_i32_0 = arith.constant 0 : i32
    %c0_i32_1 = arith.constant 0 : i32
    return %c0_i32, %c0_i32_0 : i32, i32
  }
  func.func @transform_9(%arg0: i32) -> (i32, i32) {
    %c0_i32 = arith.constant 0 : i32
    %c0_i32_0 = arith.constant 0 : i32
    %c0_i32_1 = arith.constant 0 : i32
    return %c0_i32, %c0_i32_0 : i32, i32
  }
  func.func @transform_10(%arg0: i32) -> (i32, i32) {
    %c0_i32 = arith.constant 0 : i32
    %c0_i32_0 = arith.constant 0 : i32
    %c0_i32_1 = arith.constant 0 : i32
    return %c0_i32, %c0_i32_0 : i32, i32
  }
  func.func @transform_11(%arg0: i32) -> (i32, i32) {
    %c0_i32 = arith.constant 0 : i32
    %c0_i32_0 = arith.constant 0 : i32
    %c0_i32_1 = arith.constant 0 : i32
    return %c0_i32, %c0_i32_0 : i32, i32
  }
  func.func @transform_12(%arg0: i32) -> (i32, i32) {
    %c0_i32 = arith.constant 0 : i32
    %c0_i32_0 = arith.constant 0 : i32
    %c0_i32_1 = arith.constant 0 : i32
    return %c0_i32, %c0_i32_0 : i32, i32
  }
  func.func @transform_13(%arg0: i32) -> (i32, i32) {
    %c0_i32 = arith.constant 0 : i32
    %c0_i32_0 = arith.constant 0 : i32
    %c0_i32_1 = arith.constant 0 : i32
    return %c0_i32, %c0_i32_0 : i32, i32
  }
  func.func @transform_14(%arg0: i32) -> (i32, i32) {
    %c0_i32 = arith.constant 0 : i32
    %c0_i32_0 = arith.constant 0 : i32
    %c0_i32_1 = arith.constant 0 : i32
    return %c0_i32, %c0_i32_0 : i32, i32
  }
  func.func @transform_15(%arg0: i32) -> (i32, i32) {
    %c0_i32 = arith.constant 0 : i32
    %c0_i32_0 = arith.constant 0 : i32
    return %arg0, %c0_i32 : i32, i32
  }
}

</mosaic_0001>

<llo_original>
// kernel: tpu_custom_call.1
$region0: #{tpu_custom_call.1}
  #allocation0 [shape = 'u32[]', space=smem, size = 0x4, offset = 0x4, fixed_abs, tag = 'smem constant byte address 0x4 - core index']
  #allocation1 [shape = 'u32[144,128]{1,0:T(1,128)}', space=vmem, size = 0x12000, scoped, tag = 'internal scratch']
  %s0 = inlined_call_operand.hbm [shape: bf16[16,128], index: 0, kind: input, shape index: {}]
  %s1 = inlined_call_operand.hbm [shape: bf16[128,128], index: 1, kind: input, shape index: {}]
  %s2 = inlined_call_operand.vmem [shape: f32[1,128], index: 2, kind: input, shape index: {}]
  %s3 = inlined_call_operand.hbm [shape: bf16[128,128], index: 3, kind: input, shape index: {}]
  %s4 = inlined_call_operand.vmem [shape: f32[1,128], index: 4, kind: input, shape index: {}]
  %s5 = inlined_call_operand.hbm [shape: bf16[128,128], index: 5, kind: input, shape index: {}]
  %s6 = inlined_call_operand.vmem [shape: f32[1,128], index: 6, kind: input, shape index: {}]
  %s7 = inlined_call_operand.hbm [shape: bf16[128,128], index: 7, kind: input, shape index: {}]
  %s8 = inlined_call_operand.vmem [shape: f32[1,128], index: 8, kind: input, shape index: {}]
  %s9 = inlined_call_operand.hbm [shape: bf16[128,256], index: 9, kind: input, shape index: {}]
  %s10 = inlined_call_operand.vmem [shape: f32[1,256], index: 10, kind: input, shape index: {}]
  %s11 = inlined_call_operand.hbm [shape: bf16[128,128], index: 11, kind: input, shape index: {}]
  %s12 = inlined_call_operand.vmem [shape: f32[1,128], index: 12, kind: input, shape index: {}]
  %s13 = inlined_call_operand.hbm [shape: bf16[128,128], index: 13, kind: input, shape index: {}]
  %s14 = inlined_call_operand.vmem [shape: f32[1,128], index: 14, kind: input, shape index: {}]
  %s15 = inlined_call_operand.hbm [shape: bf16[16,256], index: 15, kind: output, shape index: {}]
  %s16 = sld [smem:[#allocation0]]
  $region102: #{tpu_custom_call.1} parent=0
    _
  %s18 = ssub.s32 1, %s16
  %s19 = scalar_select 0, %s18, %s16
  $region1: #{tpu_custom_call.1} parent=0
    #allocation2 [shape = 'u8[4096]{0}', space=vmem, size = 0x1000, scoped, tag = 'input window, operand 0, single buffered']
    #allocation3 [shape = 's32[1]{0}', space=sflag, size = 0x4, scoped, tag = 'scoped memory for tpu_custom_call.1']
    #allocation4 [shape = 's32[1]{0}', space=sflag, size = 0x4, scoped, tag = 'scoped memory for tpu_custom_call.1']
    #allocation5 [shape = 'u8[32768]{0}', space=vmem, size = 0x8000, scoped, tag = 'input window, operand 1, single buffered']
    #allocation6 [shape = 's32[1]{0}', space=sflag, size = 0x4, scoped, tag = 'scoped memory for tpu_custom_call.1']
    #allocation7 [shape = 'u8[32768]{0}', space=vmem, size = 0x8000, scoped, tag = 'input window, operand 3, single buffered']
    #allocation8 [shape = 'u8[32768]{0}', space=vmem, size = 0x8000, scoped, tag = 'input window, operand 5, single buffered']
    #allocation9 [shape = 's32[1]{0}', space=sflag, size = 0x4, scoped, tag = 'scoped memory for tpu_custom_call.1']
    #allocation10 [shape = 'u8[32768]{0}', space=vmem, size = 0x8000, scoped, tag = 'input window, operand 7, single buffered']
    #allocation11 [shape = 'u8[65536]{0}', space=vmem, size = 0x10000, scoped, tag = 'input window, operand 9, single buffered']
    #allocation12 [shape = 's32[1]{0}', space=sflag, size = 0x4, scoped, tag = 'scoped memory for tpu_custom_call.1']
    #allocation13 [shape = 'u8[32768]{0}', space=vmem, size = 0x8000, scoped, tag = 'input window, operand 11, single buffered']
    #allocation14 [shape = 'u8[32768]{0}', space=vmem, size = 0x8000, scoped, tag = 'input window, operand 13, single buffered']
    #allocation15 [shape = 's32[1]{0}', space=sflag, size = 0x4, scoped, tag = 'scoped memory for tpu_custom_call.1']
    #allocation16 [shape = 'u8[8192]{0}', space=vmem, size = 0x2000, scoped, tag = 'output window, operand 0, single buffered']
    %20 = vsyncpa [#allocation3], 0
    %21 = vsyncpa [#allocation6], 0
    %22 = vsyncpa [#allocation9], 0
    %23 = vsyncpa [#allocation12], 0
    %24 = vsyncpa [#allocation15], 0
    %25 = vsyncpa [#allocation4], 0
    // Predicated region
    $region2: #{tpu_custom_call.1} parent=1 // pred_check
      _
    $region3: #{tpu_custom_call.1} parent=1 // pred_check_branch
      %27 = sbr.rel (0) target = $region5
    $region4: #{tpu_custom_call.1} parent=1 // pred_region
      %s29 = ssub.s32 128, 128
      %30 = vsyncadd [#allocation3], %s29
      %s31 = sshll.u32 [#allocation2], 4
      %s32 = int_to_ptr.vmem [resolvable:$true] %s31
      %37 = dma.hbm_to_vmem [thread:$0]  %s0, 128, %s32, [#allocation3], 64, 64, 4
    $region5: #{tpu_custom_call.1} parent=1 // pred_fallthru
      _
    // Predicated region
    $region6: #{tpu_custom_call.1} parent=1 // pred_check
      _
    $region7: #{tpu_custom_call.1} parent=1 // pred_check_branch
      %39 = sbr.rel (0) target = $region9
    $region8: #{tpu_custom_call.1} parent=1 // pred_region
      %s41 = ssub.s32 1024, 1024
      %42 = vsyncadd [#allocation6], %s41
      %s43 = sshll.u32 [#allocation5], 4
      %s44 = int_to_ptr.vmem [resolvable:$true] %s43
      %49 = dma.hbm_to_vmem [thread:$0]  %s1, 1024, %s44, [#allocation6], 64, 64, 4
    $region9: #{tpu_custom_call.1} parent=1 // pred_fallthru
      _
    // Predicated region
    $region10: #{tpu_custom_call.1} parent=1 // pred_check
      _
    $region11: #{tpu_custom_call.1} parent=1 // pred_check_branch
      %51 = sbr.rel (0) target = $region13
    $region12: #{tpu_custom_call.1} parent=1 // pred_region
      _
    $region13: #{tpu_custom_call.1} parent=1 // pred_fallthru
      _
    // Predicated region
    $region14: #{tpu_custom_call.1} parent=1 // pred_check
      _
    $region15: #{tpu_custom_call.1} parent=1 // pred_check_branch
      %53 = sbr.rel (0) target = $region17
    $region16: #{tpu_custom_call.1} parent=1 // pred_region
      %s55 = ssub.s32 1024, 1024
      %56 = vsyncadd [#allocation6], %s55
      %s57 = sshll.u32 [#allocation7], 4
      %s58 = int_to_ptr.vmem [resolvable:$true] %s57
      %63 = dma.hbm_to_vmem [thread:$0]  %s3, 1024, %s58, [#allocation6], 64, 64, 4
    $region17: #{tpu_custom_call.1} parent=1 // pred_fallthru
      _
    // Predicated region
    $region18: #{tpu_custom_call.1} parent=1 // pred_check
      _
    $region19: #{tpu_custom_call.1} parent=1 // pred_check_branch
      %65 = sbr.rel (0) target = $region21
    $region20: #{tpu_custom_call.1} parent=1 // pred_region
      _
    $region21: #{tpu_custom_call.1} parent=1 // pred_fallthru
      _
    // Predicated region
    $region22: #{tpu_custom_call.1} parent=1 // pred_check
      _
    $region23: #{tpu_custom_call.1} parent=1 // pred_check_branch
      %67 = sbr.rel (0) target = $region25
    $region24: #{tpu_custom_call.1} parent=1 // pred_region
      %s69 = ssub.s32 1024, 1024
      %70 = vsyncadd [#allocation9], %s69
      %s71 = sshll.u32 [#allocation8], 4
      %s72 = int_to_ptr.vmem [resolvable:$true] %s71
      %77 = dma.hbm_to_vmem [thread:$0]  %s5, 1024, %s72, [#allocation9], 64, 64, 4
    $region25: #{tpu_custom_call.1} parent=1 // pred_fallthru
      _
    // Predicated region
    $region26: #{tpu_custom_call.1} parent=1 // pred_check
      _
    $region27: #{tpu_custom_call.1} parent=1 // pred_check_branch
      %79 = sbr.rel (0) target = $region29
    $region28: #{tpu_custom_call.1} parent=1 // pred_region
      _
    $region29: #{tpu_custom_call.1} parent=1 // pred_fallthru
      _
    // Predicated region
    $region30: #{tpu_custom_call.1} parent=1 // pred_check
      _
    $region31: #{tpu_custom_call.1} parent=1 // pred_check_branch
      %81 = sbr.rel (0) target = $region33
    $region32: #{tpu_custom_call.1} parent=1 // pred_region
      %s83 = ssub.s32 1024, 1024
      %84 = vsyncadd [#allocation9], %s83
      %s85 = sshll.u32 [#allocation10], 4
      %s86 = int_to_ptr.vmem [resolvable:$true] %s85
      %91 = dma.hbm_to_vmem [thread:$0]  %s7, 1024, %s86, [#allocation9], 64, 64, 4
    $region33: #{tpu_custom_call.1} parent=1 // pred_fallthru
      _
    // Predicated region
    $region34: #{tpu_custom_call.1} parent=1 // pred_check
      _
    $region35: #{tpu_custom_call.1} parent=1 // pred_check_branch
      %93 = sbr.rel (0) target = $region37
    $region36: #{tpu_custom_call.1} parent=1 // pred_region
      _
    $region37: #{tpu_custom_call.1} parent=1 // pred_fallthru
      _
    // Predicated region
    $region38: #{tpu_custom_call.1} parent=1 // pred_check
      _
    $region39: #{tpu_custom_call.1} parent=1 // pred_check_branch
      %95 = sbr.rel (0) target = $region41
    $region40: #{tpu_custom_call.1} parent=1 // pred_region
      %s97 = ssub.s32 2048, 2048
      %98 = vsyncadd [#allocation12], %s97
      %s99 = sshll.u32 [#allocation11], 4
      %s100 = int_to_ptr.vmem [resolvable:$true] %s99
      %105 = dma.hbm_to_vmem [thread:$0]  %s9, 2048, %s100, [#allocation12], 128, 128, 8
    $region41: #{tpu_custom_call.1} parent=1 // pred_fallthru
      _
    // Predicated region
    $region42: #{tpu_custom_call.1} parent=1 // pred_check
      _
    $region43: #{tpu_custom_call.1} parent=1 // pred_check_branch
      %107 = sbr.rel (0) target = $region45
    $region44: #{tpu_custom_call.1} parent=1 // pred_region
      _
    $region45: #{tpu_custom_call.1} parent=1 // pred_fallthru
      _
    // Predicated region
    $region46: #{tpu_custom_call.1} parent=1 // pred_check
      _
    $region47: #{tpu_custom_call.1} parent=1 // pred_check_branch
      %109 = sbr.rel (0) target = $region49
    $region48: #{tpu_custom_call.1} parent=1 // pred_region
      %s111 = ssub.s32 1024, 1024
      %112 = vsyncadd [#allocation12], %s111
      %s113 = sshll.u32 [#allocation13], 4
      %s114 = int_to_ptr.vmem [resolvable:$true] %s113
      %119 = dma.hbm_to_vmem [thread:$0]  %s11, 1024, %s114, [#allocation12], 64, 64, 4
    $region49: #{tpu_custom_call.1} parent=1 // pred_fallthru
      _
    // Predicated region
    $region50: #{tpu_custom_call.1} parent=1 // pred_check
      _
    $region51: #{tpu_custom_call.1} parent=1 // pred_check_branch
      %121 = sbr.rel (0) target = $region53
    $region52: #{tpu_custom_call.1} parent=1 // pred_region
      _
    $region53: #{tpu_custom_call.1} parent=1 // pred_fallthru
      _
    // Predicated region
    $region54: #{tpu_custom_call.1} parent=1 // pred_check
      _
    $region55: #{tpu_custom_call.1} parent=1 // pred_check_branch
      %123 = sbr.rel (0) target = $region57
    $region56: #{tpu_custom_call.1} parent=1 // pred_region
      %s125 = ssub.s32 1024, 1024
      %126 = vsyncadd [#allocation15], %s125
      %s127 = sshll.u32 [#allocation14], 4
      %s128 = int_to_ptr.vmem [resolvable:$true] %s127
      %133 = dma.hbm_to_vmem [thread:$0]  %s13, 1024, %s128, [#allocation15], 64, 64, 4
    $region57: #{tpu_custom_call.1} parent=1 // pred_fallthru
      _
    // Predicated region
    $region58: #{tpu_custom_call.1} parent=1 // pred_check
      _
    $region59: #{tpu_custom_call.1} parent=1 // pred_check_branch
      %135 = sbr.rel (0) target = $region61
    $region60: #{tpu_custom_call.1} parent=1 // pred_region
      _
    $region61: #{tpu_custom_call.1} parent=1 // pred_fallthru
      _
    // Predicated region
    $region62: #{tpu_custom_call.1} parent=1 // pred_check
      _
    $region63: #{tpu_custom_call.1} parent=1 // pred_check_branch
      %137 = sbr.rel (0) target = $region65
    $region64: #{tpu_custom_call.1} parent=1 // pred_region
      %138 = dma.done [#allocation3], 128
    $region65: #{tpu_custom_call.1} parent=1 // pred_fallthru
      _
    // Predicated region
    $region66: #{tpu_custom_call.1} parent=1 // pred_check
      _
    $region67: #{tpu_custom_call.1} parent=1 // pred_check_branch
      %140 = sbr.rel (0) target = $region69
    $region68: #{tpu_custom_call.1} parent=1 // pred_region
      %141 = dma.done [#allocation6], 1024
    $region69: #{tpu_custom_call.1} parent=1 // pred_fallthru
      _
    // Predicated region
    $region70: #{tpu_custom_call.1} parent=1 // pred_check
      _
    $region71: #{tpu_custom_call.1} parent=1 // pred_check_branch
      %143 = sbr.rel (0) target = $region73
    $region72: #{tpu_custom_call.1} parent=1 // pred_region
      %144 = dma.done [#allocation6], 1024
    $region73: #{tpu_custom_call.1} parent=1 // pred_fallthru
      _
    // Predicated region
    $region74: #{tpu_custom_call.1} parent=1 // pred_check
      _
    $region75: #{tpu_custom_call.1} parent=1 // pred_check_branch
      %146 = sbr.rel (0) target = $region77
    $region76: #{tpu_custom_call.1} parent=1 // pred_region
      %147 = dma.done [#allocation9], 1024
    $region77: #{tpu_custom_call.1} parent=1 // pred_fallthru
      _
    // Predicated region
    $region78: #{tpu_custom_call.1} parent=1 // pred_check
      _
    $region79: #{tpu_custom_call.1} parent=1 // pred_check_branch
      %149 = sbr.rel (0) target = $region81
    $region80: #{tpu_custom_call.1} parent=1 // pred_region
      %150 = dma.done [#allocation9], 1024
    $region81: #{tpu_custom_call.1} parent=1 // pred_fallthru
      _
    // Predicated region
    $region82: #{tpu_custom_call.1} parent=1 // pred_check
      _
    $region83: #{tpu_custom_call.1} parent=1 // pred_check_branch
      %152 = sbr.rel (0) target = $region85
    $region84: #{tpu_custom_call.1} parent=1 // pred_region
      %153 = dma.done [#allocation12], 2048
    $region85: #{tpu_custom_call.1} parent=1 // pred_fallthru
      _
    // Predicated region
    $region86: #{tpu_custom_call.1} parent=1 // pred_check
      _
    $region87: #{tpu_custom_call.1} parent=1 // pred_check_branch
      %155 = sbr.rel (0) target = $region89
    $region88: #{tpu_custom_call.1} parent=1 // pred_region
      %156 = dma.done [#allocation12], 1024
    $region89: #{tpu_custom_call.1} parent=1 // pred_fallthru
      _
    // Predicated region
    $region90: #{tpu_custom_call.1} parent=1 // pred_check
      _
    $region91: #{tpu_custom_call.1} parent=1 // pred_check_branch
      %158 = sbr.rel (0) target = $region93
    $region92: #{tpu_custom_call.1} parent=1 // pred_region
      %159 = dma.done [#allocation15], 1024
    $region93: #{tpu_custom_call.1} parent=1 // pred_fallthru
      _
    %v161 = vld [vmem:[#allocation2] sm:$0xf]
    %v162 = vld [vmem:[#allocation2 + $0x4] sm:$0xf]
    %v163 = vld [vmem:[#allocation5] sm:$0xf]
    %v164 = vld [vmem:[#allocation5 + $0x4] sm:$0xf]
    %v165 = vld [vmem:[#allocation5 + $0x8] sm:$0xf]
    %v166 = vld [vmem:[#allocation5 + $0xc] sm:$0xf]
    %v167 = vld [vmem:[#allocation5 + $0x10] sm:$0xf]
    %v168 = vld [vmem:[#allocation5 + $0x14] sm:$0xf]
    %v169 = vld [vmem:[#allocation5 + $0x18] sm:$0xf]
    %v170 = vld [vmem:[#allocation5 + $0x1c] sm:$0xf]
    %v171 = vld [vmem:[#allocation5 + $0x20] sm:$0xf]
    %v172 = vld [vmem:[#allocation5 + $0x24] sm:$0xf]
    %v173 = vld [vmem:[#allocation5 + $0x28] sm:$0xf]
    %v174 = vld [vmem:[#allocation5 + $0x2c] sm:$0xf]
    %v175 = vld [vmem:[#allocation5 + $0x30] sm:$0xf]
    %v176 = vld [vmem:[#allocation5 + $0x34] sm:$0xf]
    %v177 = vld [vmem:[#allocation5 + $0x38] sm:$0xf]
    %v178 = vld [vmem:[#allocation5 + $0x3c] sm:$0xf]
    %v179 = vld [vmem:[%s2] sm:$0x1]
    %v181 = vlaneseq
    %v182 = vshrl.u32 %v181, 7
    %v183 = vsub.s32 0, %v182
    %v184 = vrot.slane %v179, %v183
    %v188 = vunpack.c.l.b16 %v161
    %v189 = vunpack.c.l.b16 %v162
    %v190 = vpack.c.b16 %v189, %v188
    %v208 = vunpack.c.l.b16 %v163
    %v209 = vunpack.c.l.b16 %v164
    %v210 = vunpack.c.l.b16 %v165
    %v211 = vunpack.c.l.b16 %v166
    %v212 = vunpack.c.l.b16 %v167
    %v213 = vunpack.c.l.b16 %v168
    %v214 = vunpack.c.l.b16 %v169
    %v215 = vunpack.c.l.b16 %v170
    %v216 = vunpack.c.l.b16 %v171
    %v217 = vunpack.c.l.b16 %v172
    %v218 = vunpack.c.l.b16 %v173
    %v219 = vunpack.c.l.b16 %v174
    %v220 = vunpack.c.l.b16 %v175
    %v221 = vunpack.c.l.b16 %v176
    %v222 = vunpack.c.l.b16 %v177
    %v223 = vunpack.c.l.b16 %v178
    %v224 = vpack.c.b16 %v209, %v208
    %v225 = vpack.c.b16 %v211, %v210
    %v226 = vpack.c.b16 %v213, %v212
    %v227 = vpack.c.b16 %v215, %v214
    %v228 = vpack.c.b16 %v217, %v216
    %v229 = vpack.c.b16 %v219, %v218
    %v230 = vpack.c.b16 %v221, %v220
    %v231 = vpack.c.b16 %v223, %v222
    %240 = vmatprep.subr.bf16.mxu0 0
    %241 = vmatpush1.bf16.msra.mxu0 %v224
    %242 = vmatprep.subr.bf16.mxu0 0
    %243 = vmatpush1.bf16.msra.mxu0 %v225
    %244 = vmatprep.subr.bf16.mxu0 0
    %245 = vmatpush1.bf16.msra.mxu0 %v226
    %246 = vmatprep.subr.bf16.mxu0 0
    %247 = vmatpush1.bf16.msra.mxu0 %v227
    %248 = vmatprep.subr.bf16.mxu0 0
    %249 = vmatpush1.bf16.msra.mxu0 %v228
    %250 = vmatprep.subr.bf16.mxu0 0
    %251 = vmatpush1.bf16.msra.mxu0 %v229
    %252 = vmatprep.subr.bf16.mxu0 0
    %253 = vmatpush1.bf16.msra.mxu0 %v230
    %254 = vmatprep.subr.bf16.mxu0 0
    %255 = vmatpush1.bf16.msra.mxu0 %v231
    %256 = vmatprep.subr.bf16.mxu0 0
    %257 = vmatpush1.bf16.msra.mxu0 0
    %258 = vmatprep.subr.bf16.mxu0 0
    %259 = vmatpush1.bf16.msra.mxu0 0
    %260 = vmatprep.subr.bf16.mxu0 0
    %261 = vmatpush1.bf16.msra.mxu0 0
    %262 = vmatprep.subr.bf16.mxu0 0
    %263 = vmatpush1.bf16.msra.mxu0 0
    %264 = vmatprep.subr.bf16.mxu0 0
    %265 = vmatpush1.bf16.msra.mxu0 0
    %266 = vmatprep.subr.bf16.mxu0 0
    %267 = vmatpush1.bf16.msra.mxu0 0
    %268 = vmatprep.subr.bf16.mxu0 0
    %269 = vmatpush1.bf16.msra.mxu0 0
    %270 = vmatprep.subr.bf16.mxu0 0
    %271 = vmatpush1.bf16.msra.mxu0 0
    %272 = vmatprep.mubr.bf16.mxu0 0
    %273 = vmatmul.mubr.bf16.gmra.mrb[0].mxu0 %v190
    %v274 = vpop.f32.mrb[0].mxu0
    %v275 = vadd.f32 %v184, %v274
    %v276 = vpop.f32.mrb[0].mxu0
    %v277 = vpop.f32.mrb[0].mxu0
    %v278 = vadd.f32 %v184, %v277
    %v279 = vpop.f32.mrb[0].mxu0
    %280 = vdwg.mxu0
    %v281 = vmax.f32 %v275, 0.0
    %v282 = vmax.f32 %v278, 0.0
    %v283 = vpack.c.bf16 %v282, %v281
    %v284 = vld [vmem:[#allocation7] sm:$0xf]
    %v285 = vld [vmem:[#allocation7 + $0x4] sm:$0xf]
    %v286 = vld [vmem:[#allocation7 + $0x8] sm:$0xf]
    %v287 = vld [vmem:[#allocation7 + $0xc] sm:$0xf]
    %v288 = vld [vmem:[#allocation7 + $0x10] sm:$0xf]
    %v289 = vld [vmem:[#allocation7 + $0x14] sm:$0xf]
    %v290 = vld [vmem:[#allocation7 + $0x18] sm:$0xf]
    %v291 = vld [vmem:[#allocation7 + $0x1c] sm:$0xf]
    %v292 = vld [vmem:[#allocation7 + $0x20] sm:$0xf]
    %v293 = vld [vmem:[#allocation7 + $0x24] sm:$0xf]
    %v294 = vld [vmem:[#allocation7 + $0x28] sm:$0xf]
    %v295 = vld [vmem:[#allocation7 + $0x2c] sm:$0xf]
    %v296 = vld [vmem:[#allocation7 + $0x30] sm:$0xf]
    %v297 = vld [vmem:[#allocation7 + $0x34] sm:$0xf]
    %v298 = vld [vmem:[#allocation7 + $0x38] sm:$0xf]
    %v299 = vld [vmem:[#allocation7 + $0x3c] sm:$0xf]
    %v300 = vld [vmem:[%s4] sm:$0x1]
    %v302 = vlaneseq
    %v303 = vshrl.u32 %v302, 7
    %v304 = vsub.s32 0, %v303
    %v305 = vrot.slane %v300, %v304
    %v323 = vunpack.c.l.b16 %v284
    %v324 = vunpack.c.l.b16 %v285
    %v325 = vunpack.c.l.b16 %v286
    %v326 = vunpack.c.l.b16 %v287
    %v327 = vunpack.c.l.b16 %v288
    %v328 = vunpack.c.l.b16 %v289
    %v329 = vunpack.c.l.b16 %v290
    %v330 = vunpack.c.l.b16 %v291
    %v331 = vunpack.c.l.b16 %v292
    %v332 = vunpack.c.l.b16 %v293
    %v333 = vunpack.c.l.b16 %v294
    %v334 = vunpack.c.l.b16 %v295
    %v335 = vunpack.c.l.b16 %v296
    %v336 = vunpack.c.l.b16 %v297
    %v337 = vunpack.c.l.b16 %v298
    %v338 = vunpack.c.l.b16 %v299
    %v339 = vpack.c.b16 %v324, %v323
    %v340 = vpack.c.b16 %v326, %v325
    %v341 = vpack.c.b16 %v328, %v327
    %v342 = vpack.c.b16 %v330, %v329
    %v343 = vpack.c.b16 %v332, %v331
    %v344 = vpack.c.b16 %v334, %v333
    %v345 = vpack.c.b16 %v336, %v335
    %v346 = vpack.c.b16 %v338, %v337
    %355 = vmatprep.subr.bf16.mxu0 0
    %356 = vmatpush1.bf16.msra.mxu0 %v339
    %357 = vmatprep.subr.bf16.mxu0 0
    %358 = vmatpush1.bf16.msra.mxu0 %v340
    %359 = vmatprep.subr.bf16.mxu0 0
    %360 = vmatpush1.bf16.msra.mxu0 %v341
    %361 = vmatprep.subr.bf16.mxu0 0
    %362 = vmatpush1.bf16.msra.mxu0 %v342
    %363 = vmatprep.subr.bf16.mxu0 0
    %364 = vmatpush1.bf16.msra.mxu0 %v343
    %365 = vmatprep.subr.bf16.mxu0 0
    %366 = vmatpush1.bf16.msra.mxu0 %v344
    %367 = vmatprep.subr.bf16.mxu0 0
    %368 = vmatpush1.bf16.msra.mxu0 %v345
    %369 = vmatprep.subr.bf16.mxu0 0
    %370 = vmatpush1.bf16.msra.mxu0 %v346
    %371 = vmatprep.subr.bf16.mxu0 0
    %372 = vmatpush1.bf16.msra.mxu0 0
    %373 = vmatprep.subr.bf16.mxu0 0
    %374 = vmatpush1.bf16.msra.mxu0 0
    %375 = vmatprep.subr.bf16.mxu0 0
    %376 = vmatpush1.bf16.msra.mxu0 0
    %377 = vmatprep.subr.bf16.mxu0 0
    %378 = vmatpush1.bf16.msra.mxu0 0
    %379 = vmatprep.subr.bf16.mxu0 0
    %380 = vmatpush1.bf16.msra.mxu0 0
    %381 = vmatprep.subr.bf16.mxu0 0
    %382 = vmatpush1.bf16.msra.mxu0 0
    %383 = vmatprep.subr.bf16.mxu0 0
    %384 = vmatpush1.bf16.msra.mxu0 0
    %385 = vmatprep.subr.bf16.mxu0 0
    %386 = vmatpush1.bf16.msra.mxu0 0
    %387 = vmatprep.mubr.bf16.mxu0 0
    %388 = vmatmul.mubr.bf16.gmra.mrb[0].mxu0 %v283
    %v389 = vpop.f32.mrb[0].mxu0
    %v390 = vadd.f32 %v305, %v389
    %v391 = vpop.f32.mrb[0].mxu0
    %v392 = vpop.f32.mrb[0].mxu0
    %v393 = vadd.f32 %v305, %v392
    %v394 = vpop.f32.mrb[0].mxu0
    %395 = vdwg.mxu0
    %v396 = vmax.f32 %v390, 0.0
    %v397 = vmax.f32 %v393, 0.0
    %v398 = vpack.c.bf16 %v397, %v396
    %v399 = vld [vmem:[#allocation8] sm:$0xf]
    %v400 = vld [vmem:[#allocation8 + $0x4] sm:$0xf]
    %v401 = vld [vmem:[#allocation8 + $0x8] sm:$0xf]
    %v402 = vld [vmem:[#allocation8 + $0xc] sm:$0xf]
    %v403 = vld [vmem:[#allocation8 + $0x10] sm:$0xf]
    %v404 = vld [vmem:[#allocation8 + $0x14] sm:$0xf]
    %v405 = vld [vmem:[#allocation8 + $0x18] sm:$0xf]
    %v406 = vld [vmem:[#allocation8 + $0x1c] sm:$0xf]
    %v407 = vld [vmem:[#allocation8 + $0x20] sm:$0xf]
    %v408 = vld [vmem:[#allocation8 + $0x24] sm:$0xf]
    %v409 = vld [vmem:[#allocation8 + $0x28] sm:$0xf]
    %v410 = vld [vmem:[#allocation8 + $0x2c] sm:$0xf]
    %v411 = vld [vmem:[#allocation8 + $0x30] sm:$0xf]
    %v412 = vld [vmem:[#allocation8 + $0x34] sm:$0xf]
    %v413 = vld [vmem:[#allocation8 + $0x38] sm:$0xf]
    %v414 = vld [vmem:[#allocation8 + $0x3c] sm:$0xf]
    %v415 = vld [vmem:[%s6] sm:$0x1]
    %v417 = vlaneseq
    %v418 = vshrl.u32 %v417, 7
    %v419 = vsub.s32 0, %v418
    %v420 = vrot.slane %v415, %v419
    %v438 = vunpack.c.l.b16 %v399
    %v439 = vunpack.c.l.b16 %v400
    %v440 = vunpack.c.l.b16 %v401
    %v441 = vunpack.c.l.b16 %v402
    %v442 = vunpack.c.l.b16 %v403
    %v443 = vunpack.c.l.b16 %v404
    %v444 = vunpack.c.l.b16 %v405
    %v445 = vunpack.c.l.b16 %v406
    %v446 = vunpack.c.l.b16 %v407
    %v447 = vunpack.c.l.b16 %v408
    %v448 = vunpack.c.l.b16 %v409
    %v449 = vunpack.c.l.b16 %v410
    %v450 = vunpack.c.l.b16 %v411
    %v451 = vunpack.c.l.b16 %v412
    %v452 = vunpack.c.l.b16 %v413
    %v453 = vunpack.c.l.b16 %v414
    %v454 = vpack.c.b16 %v439, %v438
    %v455 = vpack.c.b16 %v441, %v440
    %v456 = vpack.c.b16 %v443, %v442
    %v457 = vpack.c.b16 %v445, %v444
    %v458 = vpack.c.b16 %v447, %v446
    %v459 = vpack.c.b16 %v449, %v448
    %v460 = vpack.c.b16 %v451, %v450
    %v461 = vpack.c.b16 %v453, %v452
    %470 = vmatprep.subr.bf16.mxu0 0
    %471 = vmatpush1.bf16.msra.mxu0 %v454
    %472 = vmatprep.subr.bf16.mxu0 0
    %473 = vmatpush1.bf16.msra.mxu0 %v455
    %474 = vmatprep.subr.bf16.mxu0 0
    %475 = vmatpush1.bf16.msra.mxu0 %v456
    %476 = vmatprep.subr.bf16.mxu0 0
    %477 = vmatpush1.bf16.msra.mxu0 %v457
    %478 = vmatprep.subr.bf16.mxu0 0
    %479 = vmatpush1.bf16.msra.mxu0 %v458
    %480 = vmatprep.subr.bf16.mxu0 0
    %481 = vmatpush1.bf16.msra.mxu0 %v459
    %482 = vmatprep.subr.bf16.mxu0 0
    %483 = vmatpush1.bf16.msra.mxu0 %v460
    %484 = vmatprep.subr.bf16.mxu0 0
    %485 = vmatpush1.bf16.msra.mxu0 %v461
    %486 = vmatprep.subr.bf16.mxu0 0
    %487 = vmatpush1.bf16.msra.mxu0 0
    %488 = vmatprep.subr.bf16.mxu0 0
    %489 = vmatpush1.bf16.msra.mxu0 0
    %490 = vmatprep.subr.bf16.mxu0 0
    %491 = vmatpush1.bf16.msra.mxu0 0
    %492 = vmatprep.subr.bf16.mxu0 0
    %493 = vmatpush1.bf16.msra.mxu0 0
    %494 = vmatprep.subr.bf16.mxu0 0
    %495 = vmatpush1.bf16.msra.mxu0 0
    %496 = vmatprep.subr.bf16.mxu0 0
    %497 = vmatpush1.bf16.msra.mxu0 0
    %498 = vmatprep.subr.bf16.mxu0 0
    %499 = vmatpush1.bf16.msra.mxu0 0
    %500 = vmatprep.subr.bf16.mxu0 0
    %501 = vmatpush1.bf16.msra.mxu0 0
    %502 = vmatprep.mubr.bf16.mxu0 0
    %503 = vmatmul.mubr.bf16.gmra.mrb[0].mxu0 %v398
    %v504 = vpop.f32.mrb[0].mxu0
    %v505 = vadd.f32 %v420, %v504
    %v506 = vpop.f32.mrb[0].mxu0
    %v507 = vpop.f32.mrb[0].mxu0
    %v508 = vadd.f32 %v420, %v507
    %v509 = vpop.f32.mrb[0].mxu0
    %510 = vdwg.mxu0
    %v511 = vmax.f32 %v505, 0.0
    %v512 = vmax.f32 %v508, 0.0
    %v513 = vpack.c.bf16 %v512, %v511
    %v514 = vld [vmem:[#allocation10] sm:$0xf]
    %v515 = vld [vmem:[#allocation10 + $0x4] sm:$0xf]
    %v516 = vld [vmem:[#allocation10 + $0x8] sm:$0xf]
    %v517 = vld [vmem:[#allocation10 + $0xc] sm:$0xf]
    %v518 = vld [vmem:[#allocation10 + $0x10] sm:$0xf]
    %v519 = vld [vmem:[#allocation10 + $0x14] sm:$0xf]
    %v520 = vld [vmem:[#allocation10 + $0x18] sm:$0xf]
    %v521 = vld [vmem:[#allocation10 + $0x1c] sm:$0xf]
    %v522 = vld [vmem:[#allocation10 + $0x20] sm:$0xf]
    %v523 = vld [vmem:[#allocation10 + $0x24] sm:$0xf]
    %v524 = vld [vmem:[#allocation10 + $0x28] sm:$0xf]
    %v525 = vld [vmem:[#allocation10 + $0x2c] sm:$0xf]
    %v526 = vld [vmem:[#allocation10 + $0x30] sm:$0xf]
    %v527 = vld [vmem:[#allocation10 + $0x34] sm:$0xf]
    %v528 = vld [vmem:[#allocation10 + $0x38] sm:$0xf]
    %v529 = vld [vmem:[#allocation10 + $0x3c] sm:$0xf]
    %v530 = vld [vmem:[%s8] sm:$0x1]
    %v532 = vlaneseq
    %v533 = vshrl.u32 %v532, 7
    %v534 = vsub.s32 0, %v533
    %v535 = vrot.slane %v530, %v534
    %v553 = vunpack.c.l.b16 %v514
    %v554 = vunpack.c.l.b16 %v515
    %v555 = vunpack.c.l.b16 %v516
    %v556 = vunpack.c.l.b16 %v517
    %v557 = vunpack.c.l.b16 %v518
    %v558 = vunpack.c.l.b16 %v519
    %v559 = vunpack.c.l.b16 %v520
    %v560 = vunpack.c.l.b16 %v521
    %v561 = vunpack.c.l.b16 %v522
    %v562 = vunpack.c.l.b16 %v523
    %v563 = vunpack.c.l.b16 %v524
    %v564 = vunpack.c.l.b16 %v525
    %v565 = vunpack.c.l.b16 %v526
    %v566 = vunpack.c.l.b16 %v527
    %v567 = vunpack.c.l.b16 %v528
    %v568 = vunpack.c.l.b16 %v529
    %v569 = vpack.c.b16 %v554, %v553
    %v570 = vpack.c.b16 %v556, %v555
    %v571 = vpack.c.b16 %v558, %v557
    %v572 = vpack.c.b16 %v560, %v559
    %v573 = vpack.c.b16 %v562, %v561
    %v574 = vpack.c.b16 %v564, %v563
    %v575 = vpack.c.b16 %v566, %v565
    %v576 = vpack.c.b16 %v568, %v567
    %585 = vmatprep.subr.bf16.mxu0 0
    %586 = vmatpush1.bf16.msra.mxu0 %v569
    %587 = vmatprep.subr.bf16.mxu0 0
    %588 = vmatpush1.bf16.msra.mxu0 %v570
    %589 = vmatprep.subr.bf16.mxu0 0
    %590 = vmatpush1.bf16.msra.mxu0 %v571
    %591 = vmatprep.subr.bf16.mxu0 0
    %592 = vmatpush1.bf16.msra.mxu0 %v572
    %593 = vmatprep.subr.bf16.mxu0 0
    %594 = vmatpush1.bf16.msra.mxu0 %v573
    %595 = vmatprep.subr.bf16.mxu0 0
    %596 = vmatpush1.bf16.msra.mxu0 %v574
    %597 = vmatprep.subr.bf16.mxu0 0
    %598 = vmatpush1.bf16.msra.mxu0 %v575
    %599 = vmatprep.subr.bf16.mxu0 0
    %600 = vmatpush1.bf16.msra.mxu0 %v576
    %601 = vmatprep.subr.bf16.mxu0 0
    %602 = vmatpush1.bf16.msra.mxu0 0
    %603 = vmatprep.subr.bf16.mxu0 0
    %604 = vmatpush1.bf16.msra.mxu0 0
    %605 = vmatprep.subr.bf16.mxu0 0
    %606 = vmatpush1.bf16.msra.mxu0 0
    %607 = vmatprep.subr.bf16.mxu0 0
    %608 = vmatpush1.bf16.msra.mxu0 0
    %609 = vmatprep.subr.bf16.mxu0 0
    %610 = vmatpush1.bf16.msra.mxu0 0
    %611 = vmatprep.subr.bf16.mxu0 0
    %612 = vmatpush1.bf16.msra.mxu0 0
    %613 = vmatprep.subr.bf16.mxu0 0
    %614 = vmatpush1.bf16.msra.mxu0 0
    %615 = vmatprep.subr.bf16.mxu0 0
    %616 = vmatpush1.bf16.msra.mxu0 0
    %617 = vmatprep.mubr.bf16.mxu0 0
    %618 = vmatmul.mubr.bf16.gmra.mrb[0].mxu0 %v513
    %v619 = vpop.f32.mrb[0].mxu0
    %v620 = vadd.f32 %v535, %v619
    %v621 = vpop.f32.mrb[0].mxu0
    %v622 = vpop.f32.mrb[0].mxu0
    %v623 = vadd.f32 %v535, %v622
    %v624 = vpop.f32.mrb[0].mxu0
    %625 = vdwg.mxu0
    %v626 = vmax.f32 %v620, 0.0
    %v627 = vmax.f32 %v623, 0.0
    %v628 = vpack.c.bf16 %v627, %v626
    %v629 = vld [vmem:[#allocation11] sm:$0xff]
    %v630 = vld [vmem:[#allocation11 + $0x8] sm:$0xff]
    %v631 = vld [vmem:[#allocation11 + $0x10] sm:$0xff]
    %v632 = vld [vmem:[#allocation11 + $0x18] sm:$0xff]
    %v633 = vld [vmem:[#allocation11 + $0x20] sm:$0xff]
    %v634 = vld [vmem:[#allocation11 + $0x28] sm:$0xff]
    %v635 = vld [vmem:[#allocation11 + $0x30] sm:$0xff]
    %v636 = vld [vmem:[#allocation11 + $0x38] sm:$0xff]
    %v637 = vld [vmem:[#allocation11 + $0x40] sm:$0xff]
    %v638 = vld [vmem:[#allocation11 + $0x48] sm:$0xff]
    %v639 = vld [vmem:[#allocation11 + $0x50] sm:$0xff]
    %v640 = vld [vmem:[#allocation11 + $0x58] sm:$0xff]
    %v641 = vld [vmem:[#allocation11 + $0x60] sm:$0xff]
    %v642 = vld [vmem:[#allocation11 + $0x68] sm:$0xff]
    %v643 = vld [vmem:[#allocation11 + $0x70] sm:$0xff]
    %v644 = vld [vmem:[#allocation11 + $0x78] sm:$0xff]
    %v645 = vld [vmem:[%s10] sm:$0x3]
    %v647 = vlaneseq
    %v648 = vshrl.u32 %v647, 7
    %v649 = vsub.s32 0, %v648
    %v650 = vrot.slane %v645, %v649
    %v651 = vlaneseq
    %v652 = vshrl.u32 %v651, 7
    %v653 = vsub.s32 1, %v652
    %v654 = vrot.slane %v645, %v653
    %v673 = vunpack.c.l.b16 %v629
    %v674 = vunpack.c.h.b16 %v629
    %v675 = vunpack.c.l.b16 %v630
    %v676 = vunpack.c.h.b16 %v630
    %v677 = vunpack.c.l.b16 %v631
    %v678 = vunpack.c.h.b16 %v631
    %v679 = vunpack.c.l.b16 %v632
    %v680 = vunpack.c.h.b16 %v632
    %v681 = vunpack.c.l.b16 %v633
    %v682 = vunpack.c.h.b16 %v633
    %v683 = vunpack.c.l.b16 %v634
    %v684 = vunpack.c.h.b16 %v634
    %v685 = vunpack.c.l.b16 %v635
    %v686 = vunpack.c.h.b16 %v635
    %v687 = vunpack.c.l.b16 %v636
    %v688 = vunpack.c.h.b16 %v636
    %v689 = vunpack.c.l.b16 %v637
    %v690 = vunpack.c.h.b16 %v637
    %v691 = vunpack.c.l.b16 %v638
    %v692 = vunpack.c.h.b16 %v638
    %v693 = vunpack.c.l.b16 %v639
    %v694 = vunpack.c.h.b16 %v639
    %v695 = vunpack.c.l.b16 %v640
    %v696 = vunpack.c.h.b16 %v640
    %v697 = vunpack.c.l.b16 %v641
    %v698 = vunpack.c.h.b16 %v641
    %v699 = vunpack.c.l.b16 %v642
    %v700 = vunpack.c.h.b16 %v642
    %v701 = vunpack.c.l.b16 %v643
    %v702 = vunpack.c.h.b16 %v643
    %v703 = vunpack.c.l.b16 %v644
    %v704 = vunpack.c.h.b16 %v644
    %v705 = vpack.c.b16 %v675, %v673
    %v706 = vpack.c.b16 %v676, %v674
    %v707 = vpack.c.b16 %v679, %v677
    %v708 = vpack.c.b16 %v680, %v678
    %v709 = vpack.c.b16 %v683, %v681
    %v710 = vpack.c.b16 %v684, %v682
    %v711 = vpack.c.b16 %v687, %v685
    %v712 = vpack.c.b16 %v688, %v686
    %v713 = vpack.c.b16 %v691, %v689
    %v714 = vpack.c.b16 %v692, %v690
    %v715 = vpack.c.b16 %v695, %v693
    %v716 = vpack.c.b16 %v696, %v694
    %v717 = vpack.c.b16 %v699, %v697
    %v718 = vpack.c.b16 %v700, %v698
    %v719 = vpack.c.b16 %v703, %v701
    %v720 = vpack.c.b16 %v704, %v702
    %737 = vmatprep.subr.bf16.mxu0 %v706
    %738 = vmatpush1.bf16.msra.mxu0 %v705
    %739 = vmatprep.subr.bf16.mxu0 %v708
    %740 = vmatpush1.bf16.msra.mxu0 %v707
    %741 = vmatprep.subr.bf16.mxu0 %v710
    %742 = vmatpush1.bf16.msra.mxu0 %v709
    %743 = vmatprep.subr.bf16.mxu0 %v712
    %744 = vmatpush1.bf16.msra.mxu0 %v711
    %745 = vmatprep.subr.bf16.mxu0 %v714
    %746 = vmatpush1.bf16.msra.mxu0 %v713
    %747 = vmatprep.subr.bf16.mxu0 %v716
    %748 = vmatpush1.bf16.msra.mxu0 %v715
    %749 = vmatprep.subr.bf16.mxu0 %v718
    %750 = vmatpush1.bf16.msra.mxu0 %v717
    %751 = vmatprep.subr.bf16.mxu0 %v720
    %752 = vmatpush1.bf16.msra.mxu0 %v719
    %753 = vmatprep.subr.bf16.mxu0 0
    %754 = vmatpush1.bf16.msra.mxu0 0
    %755 = vmatprep.subr.bf16.mxu0 0
    %756 = vmatpush1.bf16.msra.mxu0 0
    %757 = vmatprep.subr.bf16.mxu0 0
    %758 = vmatpush1.bf16.msra.mxu0 0
    %759 = vmatprep.subr.bf16.mxu0 0
    %760 = vmatpush1.bf16.msra.mxu0 0
    %761 = vmatprep.subr.bf16.mxu0 0
    %762 = vmatpush1.bf16.msra.mxu0 0
    %763 = vmatprep.subr.bf16.mxu0 0
    %764 = vmatpush1.bf16.msra.mxu0 0
    %765 = vmatprep.subr.bf16.mxu0 0
    %766 = vmatpush1.bf16.msra.mxu0 0
    %767 = vmatprep.subr.bf16.mxu0 0
    %768 = vmatpush1.bf16.msra.mxu0 0
    %769 = vmatprep.mubr.bf16.mxu0 0
    %770 = vmatmul.mubr.bf16.gmra.mrb[0].mxu0 %v628
    %v771 = vpop.f32.mrb[0].mxu0
    %v772 = vadd.f32 %v650, %v771
    %v773 = vpop.f32.mrb[0].mxu0
    %v774 = vadd.f32 %v654, %v773
    %v775 = vpop.f32.mrb[0].mxu0
    %v776 = vadd.f32 %v650, %v775
    %v777 = vpop.f32.mrb[0].mxu0
    %v778 = vadd.f32 %v654, %v777
    %779 = vdwg.mxu0
    %v780 = vmax.f32 %v772, 0.0
    %v781 = vmax.f32 %v774, 0.0
    %v782 = vmax.f32 %v776, 0.0
    %v783 = vmax.f32 %v778, 0.0
    %v784 = vpack.c.bf16 %v782, %v780
    %v785 = vpack.c.bf16 %v783, %v781
    %v786 = vld [vmem:[#allocation13] sm:$0xf]
    %v787 = vld [vmem:[#allocation13 + $0x4] sm:$0xf]
    %v788 = vld [vmem:[#allocation13 + $0x8] sm:$0xf]
    %v789 = vld [vmem:[#allocation13 + $0xc] sm:$0xf]
    %v790 = vld [vmem:[#allocation13 + $0x10] sm:$0xf]
    %v791 = vld [vmem:[#allocation13 + $0x14] sm:$0xf]
    %v792 = vld [vmem:[#allocation13 + $0x18] sm:$0xf]
    %v793 = vld [vmem:[#allocation13 + $0x1c] sm:$0xf]
    %v794 = vld [vmem:[#allocation13 + $0x20] sm:$0xf]
    %v795 = vld [vmem:[#allocation13 + $0x24] sm:$0xf]
    %v796 = vld [vmem:[#allocation13 + $0x28] sm:$0xf]
    %v797 = vld [vmem:[#allocation13 + $0x2c] sm:$0xf]
    %v798 = vld [vmem:[#allocation13 + $0x30] sm:$0xf]
    %v799 = vld [vmem:[#allocation13 + $0x34] sm:$0xf]
    %v800 = vld [vmem:[#allocation13 + $0x38] sm:$0xf]
    %v801 = vld [vmem:[#allocation13 + $0x3c] sm:$0xf]
    %v802 = vld [vmem:[%s12] sm:$0x1]
    %v804 = vlaneseq
    %v805 = vshrl.u32 %v804, 7
    %v806 = vsub.s32 0, %v805
    %v807 = vrot.slane %v802, %v806
    %v825 = vunpack.c.l.b16 %v786
    %v826 = vunpack.c.l.b16 %v787
    %v827 = vunpack.c.l.b16 %v788
    %v828 = vunpack.c.l.b16 %v789
    %v829 = vunpack.c.l.b16 %v790
    %v830 = vunpack.c.l.b16 %v791
    %v831 = vunpack.c.l.b16 %v792
    %v832 = vunpack.c.l.b16 %v793
    %v833 = vunpack.c.l.b16 %v794
    %v834 = vunpack.c.l.b16 %v795
    %v835 = vunpack.c.l.b16 %v796
    %v836 = vunpack.c.l.b16 %v797
    %v837 = vunpack.c.l.b16 %v798
    %v838 = vunpack.c.l.b16 %v799
    %v839 = vunpack.c.l.b16 %v800
    %v840 = vunpack.c.l.b16 %v801
    %v841 = vpack.c.b16 %v826, %v825
    %v842 = vpack.c.b16 %v828, %v827
    %v843 = vpack.c.b16 %v830, %v829
    %v844 = vpack.c.b16 %v832, %v831
    %v845 = vpack.c.b16 %v834, %v833
    %v846 = vpack.c.b16 %v836, %v835
    %v847 = vpack.c.b16 %v838, %v837
    %v848 = vpack.c.b16 %v840, %v839
    %857 = vmatprep.subr.bf16.mxu0 0
    %858 = vmatpush1.bf16.msra.mxu0 %v841
    %859 = vmatprep.subr.bf16.mxu0 0
    %860 = vmatpush1.bf16.msra.mxu0 %v842
    %861 = vmatprep.subr.bf16.mxu0 0
    %862 = vmatpush1.bf16.msra.mxu0 %v843
    %863 = vmatprep.subr.bf16.mxu0 0
    %864 = vmatpush1.bf16.msra.mxu0 %v844
    %865 = vmatprep.subr.bf16.mxu0 0
    %866 = vmatpush1.bf16.msra.mxu0 %v845
    %867 = vmatprep.subr.bf16.mxu0 0
    %868 = vmatpush1.bf16.msra.mxu0 %v846
    %869 = vmatprep.subr.bf16.mxu0 0
    %870 = vmatpush1.bf16.msra.mxu0 %v847
    %871 = vmatprep.subr.bf16.mxu0 0
    %872 = vmatpush1.bf16.msra.mxu0 %v848
    %873 = vmatprep.subr.bf16.mxu0 0
    %874 = vmatpush1.bf16.msra.mxu0 0
    %875 = vmatprep.subr.bf16.mxu0 0
    %876 = vmatpush1.bf16.msra.mxu0 0
    %877 = vmatprep.subr.bf16.mxu0 0
    %878 = vmatpush1.bf16.msra.mxu0 0
    %879 = vmatprep.subr.bf16.mxu0 0
    %880 = vmatpush1.bf16.msra.mxu0 0
    %881 = vmatprep.subr.bf16.mxu0 0
    %882 = vmatpush1.bf16.msra.mxu0 0
    %883 = vmatprep.subr.bf16.mxu0 0
    %884 = vmatpush1.bf16.msra.mxu0 0
    %885 = vmatprep.subr.bf16.mxu0 0
    %886 = vmatpush1.bf16.msra.mxu0 0
    %887 = vmatprep.subr.bf16.mxu0 0
    %888 = vmatpush1.bf16.msra.mxu0 0
    %889 = vmatprep.mubr.bf16.mxu0 0
    %890 = vmatmul.mubr.bf16.gmra.mrb[0].mxu0 %v784
    %v891 = vpop.f32.mrb[0].mxu0
    %v892 = vadd.f32 %v807, %v891
    %v893 = vpop.f32.mrb[0].mxu0
    %v894 = vpop.f32.mrb[0].mxu0
    %v895 = vadd.f32 %v807, %v894
    %v896 = vpop.f32.mrb[0].mxu0
    %897 = vdwg.mxu0
    %v898 = vxor.u32 %v892, 2147483648
    %v899 = vxor.u32 %v895, 2147483648
    %v900 = vmul.f32 %v898, 1.442695
    %v901 = vpow.pop %v900
    %v902 = vmul.f32 %v899, 1.442695
    %v903 = vpow.pop %v902
    %v904 = vadd.f32 %v901, 1.0
    %v905 = vadd.f32 %v903, 1.0
    %v906 = vrcp.pop %v904
    %v907 = vmul.f32 1.0, %v906
    %v908 = vrcp.pop %v905
    %v909 = vmul.f32 1.0, %v908
    %v910 = vld [vmem:[#allocation14] sm:$0xf]
    %v911 = vld [vmem:[#allocation14 + $0x4] sm:$0xf]
    %v912 = vld [vmem:[#allocation14 + $0x8] sm:$0xf]
    %v913 = vld [vmem:[#allocation14 + $0xc] sm:$0xf]
    %v914 = vld [vmem:[#allocation14 + $0x10] sm:$0xf]
    %v915 = vld [vmem:[#allocation14 + $0x14] sm:$0xf]
    %v916 = vld [vmem:[#allocation14 + $0x18] sm:$0xf]
    %v917 = vld [vmem:[#allocation14 + $0x1c] sm:$0xf]
    %v918 = vld [vmem:[#allocation14 + $0x20] sm:$0xf]
    %v919 = vld [vmem:[#allocation14 + $0x24] sm:$0xf]
    %v920 = vld [vmem:[#allocation14 + $0x28] sm:$0xf]
    %v921 = vld [vmem:[#allocation14 + $0x2c] sm:$0xf]
    %v922 = vld [vmem:[#allocation14 + $0x30] sm:$0xf]
    %v923 = vld [vmem:[#allocation14 + $0x34] sm:$0xf]
    %v924 = vld [vmem:[#allocation14 + $0x38] sm:$0xf]
    %v925 = vld [vmem:[#allocation14 + $0x3c] sm:$0xf]
    %v926 = vld [vmem:[%s14] sm:$0x1]
    %v928 = vlaneseq
    %v929 = vshrl.u32 %v928, 7
    %v930 = vsub.s32 0, %v929
    %v931 = vrot.slane %v926, %v930
    %v949 = vunpack.c.l.b16 %v910
    %v950 = vunpack.c.l.b16 %v911
    %v951 = vunpack.c.l.b16 %v912
    %v952 = vunpack.c.l.b16 %v913
    %v953 = vunpack.c.l.b16 %v914
    %v954 = vunpack.c.l.b16 %v915
    %v955 = vunpack.c.l.b16 %v916
    %v956 = vunpack.c.l.b16 %v917
    %v957 = vunpack.c.l.b16 %v918
    %v958 = vunpack.c.l.b16 %v919
    %v959 = vunpack.c.l.b16 %v920
    %v960 = vunpack.c.l.b16 %v921
    %v961 = vunpack.c.l.b16 %v922
    %v962 = vunpack.c.l.b16 %v923
    %v963 = vunpack.c.l.b16 %v924
    %v964 = vunpack.c.l.b16 %v925
    %v965 = vpack.c.b16 %v950, %v949
    %v966 = vpack.c.b16 %v952, %v951
    %v967 = vpack.c.b16 %v954, %v953
    %v968 = vpack.c.b16 %v956, %v955
    %v969 = vpack.c.b16 %v958, %v957
    %v970 = vpack.c.b16 %v960, %v959
    %v971 = vpack.c.b16 %v962, %v961
    %v972 = vpack.c.b16 %v964, %v963
    %981 = vmatprep.subr.bf16.mxu0 0
    %982 = vmatpush1.bf16.msra.mxu0 %v965
    %983 = vmatprep.subr.bf16.mxu0 0
    %984 = vmatpush1.bf16.msra.mxu0 %v966
    %985 = vmatprep.subr.bf16.mxu0 0
    %986 = vmatpush1.bf16.msra.mxu0 %v967
    %987 = vmatprep.subr.bf16.mxu0 0
    %988 = vmatpush1.bf16.msra.mxu0 %v968
    %989 = vmatprep.subr.bf16.mxu0 0
    %990 = vmatpush1.bf16.msra.mxu0 %v969
    %991 = vmatprep.subr.bf16.mxu0 0
    %992 = vmatpush1.bf16.msra.mxu0 %v970
    %993 = vmatprep.subr.bf16.mxu0 0
    %994 = vmatpush1.bf16.msra.mxu0 %v971
    %995 = vmatprep.subr.bf16.mxu0 0
    %996 = vmatpush1.bf16.msra.mxu0 %v972
    %997 = vmatprep.subr.bf16.mxu0 0
    %998 = vmatpush1.bf16.msra.mxu0 0
    %999 = vmatprep.subr.bf16.mxu0 0
    %1000 = vmatpush1.bf16.msra.mxu0 0
    %1001 = vmatprep.subr.bf16.mxu0 0
    %1002 = vmatpush1.bf16.msra.mxu0 0
    %1003 = vmatprep.subr.bf16.mxu0 0
    %1004 = vmatpush1.bf16.msra.mxu0 0
    %1005 = vmatprep.subr.bf16.mxu0 0
    %1006 = vmatpush1.bf16.msra.mxu0 0
    %1007 = vmatprep.subr.bf16.mxu0 0
    %1008 = vmatpush1.bf16.msra.mxu0 0
    %1009 = vmatprep.subr.bf16.mxu0 0
    %1010 = vmatpush1.bf16.msra.mxu0 0
    %1011 = vmatprep.subr.bf16.mxu0 0
    %1012 = vmatpush1.bf16.msra.mxu0 0
    %1013 = vmatprep.mubr.bf16.mxu0 0
    %1014 = vmatmul.mubr.bf16.gmra.mrb[0].mxu0 %v785
    %v1015 = vpop.f32.mrb[0].mxu0
    %v1016 = vadd.f32 %v931, %v1015
    %v1017 = vpop.f32.mrb[0].mxu0
    %v1018 = vpop.f32.mrb[0].mxu0
    %v1019 = vadd.f32 %v931, %v1018
    %v1020 = vpop.f32.mrb[0].mxu0
    %1021 = vdwg.mxu0
    %v1022 = vpack.c.bf16 %v909, %v907
    %v1024 = vunpack.c.l.b16 %v1022
    %v1025 = vunpack.c.h.b16 %v1022
    %v1026 = vpack.c.b16 %v1024, %v1024
    %v1027 = vpack.c.b16 %v1025, %v1025
    %1030 = vst [vmem:[#allocation16] sm:$0xf] %v1026
    %1031 = vst [vmem:[#allocation16 + $0x8] sm:$0xf] %v1027
    %v1032 = vpack.c.bf16 %v1019, %v1016
    %v1034 = vunpack.c.l.b16 %v1032
    %v1035 = vunpack.c.h.b16 %v1032
    %v1036 = vpack.c.b16 %v1034, %v1034
    %v1037 = vpack.c.b16 %v1035, %v1035
    %1040 = vst [vmem:[#allocation16 + $0x4] sm:$0xf] %v1036
    %1041 = vst [vmem:[#allocation16 + $0xc] sm:$0xf] %v1037
    // Predicated region
    $region94: #{tpu_custom_call.1} parent=1 // pred_check
      _
    $region95: #{tpu_custom_call.1} parent=1 // pred_check_branch
      %1043 = sbr.rel (0) target = $region97
    $region96: #{tpu_custom_call.1} parent=1 // pred_region
      %s1045 = ssub.s32 256, 256
      %1046 = vsyncadd [#allocation4], %s1045
      %s1047 = sshll.u32 [#allocation16], 4
      %s1048 = int_to_ptr.vmem [resolvable:$true] %s1047
      %1053 = dma.vmem_to_hbm [thread:$0]  %s1048, 256, %s15, [#allocation4], 128, 128, 8
    $region97: #{tpu_custom_call.1} parent=1 // pred_fallthru
      _
    // Predicated region
    $region98: #{tpu_custom_call.1} parent=1 // pred_check
      _
    $region99: #{tpu_custom_call.1} parent=1 // pred_check_branch
      %1055 = sbr.rel (0) target = $region101
    $region100: #{tpu_custom_call.1} parent=1 // pred_region
      %1056 = dma.done [#allocation4], 256
    $region101: #{tpu_custom_call.1} parent=1 // pred_fallthru
      _
    %1057 = vsyncpa [#allocation3], 1
    %1058 = vsyncpa [#allocation6], 1
    %1059 = vsyncpa [#allocation9], 1
    %1060 = vsyncpa [#allocation12], 1
    %1061 = vsyncpa [#allocation15], 1
    %1062 = vsyncpa [#allocation4], 1

// kernel: tpu_custom_call.1
$region0: #{tpu_custom_call.1}
  #allocation0 [shape = 'u32[]', space=smem, size = 0x4, offset = 0x4, fixed_abs, tag = 'smem constant byte address 0x4 - core index']
  #allocation1 [shape = 'u32[144,128]{1,0:T(1,128)}', space=vmem, size = 0x12000, scoped, tag = 'internal scratch']
  %s0 = inlined_call_operand.hbm [shape: bf16[16,128], index: 0, kind: input, shape index: {}]
  %s1 = inlined_call_operand.hbm [shape: bf16[128,128], index: 1, kind: input, shape index: {}]
  %s2 = inlined_call_operand.vmem [shape: f32[1,128], index: 2, kind: input, shape index: {}]
  %s3 = inlined_call_operand.hbm [shape: bf16[128,128], index: 3, kind: input, shape index: {}]
  %s4 = inlined_call_operand.vmem [shape: f32[1,128], index: 4, kind: input, shape index: {}]
  %s5 = inlined_call_operand.hbm [shape: bf16[128,128], index: 5, kind: input, shape index: {}]
  %s6 = inlined_call_operand.vmem [shape: f32[1,128], index: 6, kind: input, shape index: {}]
  %s7 = inlined_call_operand.hbm [shape: bf16[128,128], index: 7, kind: input, shape index: {}]
  %s8 = inlined_call_operand.vmem [shape: f32[1,128], index: 8, kind: input, shape index: {}]
  %s9 = inlined_call_operand.hbm [shape: bf16[128,256], index: 9, kind: input, shape index: {}]
  %s10 = inlined_call_operand.vmem [shape: f32[1,256], index: 10, kind: input, shape index: {}]
  %s11 = inlined_call_operand.hbm [shape: bf16[128,128], index: 11, kind: input, shape index: {}]
  %s12 = inlined_call_operand.vmem [shape: f32[1,128], index: 12, kind: input, shape index: {}]
  %s13 = inlined_call_operand.hbm [shape: bf16[128,128], index: 13, kind: input, shape index: {}]
  %s14 = inlined_call_operand.vmem [shape: f32[1,128], index: 14, kind: input, shape index: {}]
  %s15 = inlined_call_operand.hbm [shape: bf16[16,256], index: 15, kind: output, shape index: {}]
  %s16 = sld [smem:[#allocation0]]
  $region102: #{tpu_custom_call.1} parent=0
    _
  %s18 = ssub.s32 1, %s16
  %s19 = scalar_select 0, %s18, %s16
  $region1: #{tpu_custom_call.1} parent=0
    #allocation2 [shape = 'u8[4096]{0}', space=vmem, size = 0x1000, scoped, tag = 'input window, operand 0, single buffered']
    #allocation3 [shape = 's32[1]{0}', space=sflag, size = 0x4, scoped, tag = 'scoped memory for tpu_custom_call.1']
    #allocation4 [shape = 's32[1]{0}', space=sflag, size = 0x4, scoped, tag = 'scoped memory for tpu_custom_call.1']
    #allocation5 [shape = 'u8[32768]{0}', space=vmem, size = 0x8000, scoped, tag = 'input window, operand 1, single buffered']
    #allocation6 [shape = 's32[1]{0}', space=sflag, size = 0x4, scoped, tag = 'scoped memory for tpu_custom_call.1']
    #allocation7 [shape = 'u8[32768]{0}', space=vmem, size = 0x8000, scoped, tag = 'input window, operand 3, single buffered']
    #allocation8 [shape = 'u8[32768]{0}', space=vmem, size = 0x8000, scoped, tag = 'input window, operand 5, single buffered']
    #allocation9 [shape = 's32[1]{0}', space=sflag, size = 0x4, scoped, tag = 'scoped memory for tpu_custom_call.1']
    #allocation10 [shape = 'u8[32768]{0}', space=vmem, size = 0x8000, scoped, tag = 'input window, operand 7, single buffered']
    #allocation11 [shape = 'u8[65536]{0}', space=vmem, size = 0x10000, scoped, tag = 'input window, operand 9, single buffered']
    #allocation12 [shape = 's32[1]{0}', space=sflag, size = 0x4, scoped, tag = 'scoped memory for tpu_custom_call.1']
    #allocation13 [shape = 'u8[32768]{0}', space=vmem, size = 0x8000, scoped, tag = 'input window, operand 11, single buffered']
    #allocation14 [shape = 'u8[32768]{0}', space=vmem, size = 0x8000, scoped, tag = 'input window, operand 13, single buffered']
    #allocation15 [shape = 's32[1]{0}', space=sflag, size = 0x4, scoped, tag = 'scoped memory for tpu_custom_call.1']
    #allocation16 [shape = 'u8[8192]{0}', space=vmem, size = 0x2000, scoped, tag = 'output window, operand 0, single buffered']
    %20 = vsyncpa [#allocation3], 0
    %21 = vsyncpa [#allocation6], 0
    %22 = vsyncpa [#allocation9], 0
    %23 = vsyncpa [#allocation12], 0
    %24 = vsyncpa [#allocation15], 0
    %25 = vsyncpa [#allocation4], 0
    // Predicated region
    $region2: #{tpu_custom_call.1} parent=1 // pred_check
      _
    $region3: #{tpu_custom_call.1} parent=1 // pred_check_branch
      %27 = sbr.rel (0) target = $region5
    $region4: #{tpu_custom_call.1} parent=1 // pred_region
      %s29 = ssub.s32 128, 128
      %30 = vsyncadd [#allocation3], %s29
      %s31 = sshll.u32 [#allocation2], 4
      %s32 = int_to_ptr.vmem [resolvable:$true] %s31
      %37 = dma.hbm_to_vmem [thread:$0]  %s0, 128, %s32, [#allocation3], 64, 64, 4
    $region5: #{tpu_custom_call.1} parent=1 // pred_fallthru
      _
    // Predicated region
    $region6: #{tpu_custom_call.1} parent=1 // pred_check
      _
    $region7: #{tpu_custom_call.1} parent=1 // pred_check_branch
      %39 = sbr.rel (0) target = $region9
    $region8: #{tpu_custom_call.1} parent=1 // pred_region
      %s41 = ssub.s32 1024, 1024
      %42 = vsyncadd [#allocation6], %s41
      %s43 = sshll.u32 [#allocation5], 4
      %s44 = int_to_ptr.vmem [resolvable:$true] %s43
      %49 = dma.hbm_to_vmem [thread:$0]  %s1, 1024, %s44, [#allocation6], 64, 64, 4
    $region9: #{tpu_custom_call.1} parent=1 // pred_fallthru
      _
    // Predicated region
    $region10: #{tpu_custom_call.1} parent=1 // pred_check
      _
    $region11: #{tpu_custom_call.1} parent=1 // pred_check_branch
      %51 = sbr.rel (0) target = $region13
    $region12: #{tpu_custom_call.1} parent=1 // pred_region
      _
    $region13: #{tpu_custom_call.1} parent=1 // pred_fallthru
      _
    // Predicated region
    $region14: #{tpu_custom_call.1} parent=1 // pred_check
      _
    $region15: #{tpu_custom_call.1} parent=1 // pred_check_branch
      %53 = sbr.rel (0) target = $region17
    $region16: #{tpu_custom_call.1} parent=1 // pred_region
      %s55 = ssub.s32 1024, 1024
      %56 = vsyncadd [#allocation6], %s55
      %s57 = sshll.u32 [#allocation7], 4
      %s58 = int_to_ptr.vmem [resolvable:$true] %s57
      %63 = dma.hbm_to_vmem [thread:$0]  %s3, 1024, %s58, [#allocation6], 64, 64, 4
    $region17: #{tpu_custom_call.1} parent=1 // pred_fallthru
      _
    // Predicated region
    $region18: #{tpu_custom_call.1} parent=1 // pred_check
      _
    $region19: #{tpu_custom_call.1} parent=1 // pred_check_branch
      %65 = sbr.rel (0) target = $region21
    $region20: #{tpu_custom_call.1} parent=1 // pred_region
      _
    $region21: #{tpu_custom_call.1} parent=1 // pred_fallthru
      _
    // Predicated region
    $region22: #{tpu_custom_call.1} parent=1 // pred_check
      _
    $region23: #{tpu_custom_call.1} parent=1 // pred_check_branch
      %67 = sbr.rel (0) target = $region25
    $region24: #{tpu_custom_call.1} parent=1 // pred_region
      %s69 = ssub.s32 1024, 1024
      %70 = vsyncadd [#allocation9], %s69
      %s71 = sshll.u32 [#allocation8], 4
      %s72 = int_to_ptr.vmem [resolvable:$true] %s71
      %77 = dma.hbm_to_vmem [thread:$0]  %s5, 1024, %s72, [#allocation9], 64, 64, 4
    $region25: #{tpu_custom_call.1} parent=1 // pred_fallthru
      _
    // Predicated region
    $region26: #{tpu_custom_call.1} parent=1 // pred_check
      _
    $region27: #{tpu_custom_call.1} parent=1 // pred_check_branch
      %79 = sbr.rel (0) target = $region29
    $region28: #{tpu_custom_call.1} parent=1 // pred_region
      _
    $region29: #{tpu_custom_call.1} parent=1 // pred_fallthru
      _
    // Predicated region
    $region30: #{tpu_custom_call.1} parent=1 // pred_check
      _
    $region31: #{tpu_custom_call.1} parent=1 // pred_check_branch
      %81 = sbr.rel (0) target = $region33
    $region32: #{tpu_custom_call.1} parent=1 // pred_region
      %s83 = ssub.s32 1024, 1024
      %84 = vsyncadd [#allocation9], %s83
      %s85 = sshll.u32 [#allocation10], 4
      %s86 = int_to_ptr.vmem [resolvable:$true] %s85
      %91 = dma.hbm_to_vmem [thread:$0]  %s7, 1024, %s86, [#allocation9], 64, 64, 4
    $region33: #{tpu_custom_call.1} parent=1 // pred_fallthru
      _
    // Predicated region
    $region34: #{tpu_custom_call.1} parent=1 // pred_check
      _
    $region35: #{tpu_custom_call.1} parent=1 // pred_check_branch
      %93 = sbr.rel (0) target = $region37
    $region36: #{tpu_custom_call.1} parent=1 // pred_region
      _
    $region37: #{tpu_custom_call.1} parent=1 // pred_fallthru
      _
    // Predicated region
    $region38: #{tpu_custom_call.1} parent=1 // pred_check
      _
    $region39: #{tpu_custom_call.1} parent=1 // pred_check_branch
      %95 = sbr.rel (0) target = $region41
    $region40: #{tpu_custom_call.1} parent=1 // pred_region
      %s97 = ssub.s32 2048, 2048
      %98 = vsyncadd [#allocation12], %s97
      %s99 = sshll.u32 [#allocation11], 4
      %s100 = int_to_ptr.vmem [resolvable:$true] %s99
      %105 = dma.hbm_to_vmem [thread:$0]  %s9, 2048, %s100, [#allocation12], 128, 128, 8
    $region41: #{tpu_custom_call.1} parent=1 // pred_fallthru
      _
    // Predicated region
    $region42: #{tpu_custom_call.1} parent=1 // pred_check
      _
    $region43: #{tpu_custom_call.1} parent=1 // pred_check_branch
      %107 = sbr.rel (0) target = $region45
    $region44: #{tpu_custom_call.1} parent=1 // pred_region
      _
    $region45: #{tpu_custom_call.1} parent=1 // pred_fallthru
      _
    // Predicated region
    $region46: #{tpu_custom_call.1} parent=1 // pred_check
      _
    $region47: #{tpu_custom_call.1} parent=1 // pred_check_branch
      %109 = sbr.rel (0) target = $region49
    $region48: #{tpu_custom_call.1} parent=1 // pred_region
      %s111 = ssub.s32 1024, 1024
      %112 = vsyncadd [#allocation12], %s111
      %s113 = sshll.u32 [#allocation13], 4
      %s114 = int_to_ptr.vmem [resolvable:$true] %s113
      %119 = dma.hbm_to_vmem [thread:$0]  %s11, 1024, %s114, [#allocation12], 64, 64, 4
    $region49: #{tpu_custom_call.1} parent=1 // pred_fallthru
      _
    // Predicated region
    $region50: #{tpu_custom_call.1} parent=1 // pred_check
      _
    $region51: #{tpu_custom_call.1} parent=1 // pred_check_branch
      %121 = sbr.rel (0) target = $region53
    $region52: #{tpu_custom_call.1} parent=1 // pred_region
      _
    $region53: #{tpu_custom_call.1} parent=1 // pred_fallthru
      _
    // Predicated region
    $region54: #{tpu_custom_call.1} parent=1 // pred_check
      _
    $region55: #{tpu_custom_call.1} parent=1 // pred_check_branch
      %123 = sbr.rel (0) target = $region57
    $region56: #{tpu_custom_call.1} parent=1 // pred_region
      %s125 = ssub.s32 1024, 1024
      %126 = vsyncadd [#allocation15], %s125
      %s127 = sshll.u32 [#allocation14], 4
      %s128 = int_to_ptr.vmem [resolvable:$true] %s127
      %133 = dma.hbm_to_vmem [thread:$0]  %s13, 1024, %s128, [#allocation15], 64, 64, 4
    $region57: #{tpu_custom_call.1} parent=1 // pred_fallthru
      _
    // Predicated region
    $region58: #{tpu_custom_call.1} parent=1 // pred_check
      _
    $region59: #{tpu_custom_call.1} parent=1 // pred_check_branch
      %135 = sbr.rel (0) target = $region61
    $region60: #{tpu_custom_call.1} parent=1 // pred_region
      _
    $region61: #{tpu_custom_call.1} parent=1 // pred_fallthru
      _
    // Predicated region
    $region62: #{tpu_custom_call.1} parent=1 // pred_check
      _
    $region63: #{tpu_custom_call.1} parent=1 // pred_check_branch
      %137 = sbr.rel (0) target = $region65
    $region64: #{tpu_custom_call.1} parent=1 // pred_region
      %138 = dma.done [#allocation3], 128
    $region65: #{tpu_custom_call.1} parent=1 // pred_fallthru
      _
    // Predicated region
    $region66: #{tpu_custom_call.1} parent=1 // pred_check
      _
    $region67: #{tpu_custom_call.1} parent=1 // pred_check_branch
      %140 = sbr.rel (0) target = $region69
    $region68: #{tpu_custom_call.1} parent=1 // pred_region
      %141 = dma.done [#allocation6], 1024
    $region69: #{tpu_custom_call.1} parent=1 // pred_fallthru
      _
    // Predicated region
    $region70: #{tpu_custom_call.1} parent=1 // pred_check
      _
    $region71: #{tpu_custom_call.1} parent=1 // pred_check_branch
      %143 = sbr.rel (0) target = $region73
    $region72: #{tpu_custom_call.1} parent=1 // pred_region
      %144 = dma.done [#allocation6], 1024
    $region73: #{tpu_custom_call.1} parent=1 // pred_fallthru
      _
    // Predicated region
    $region74: #{tpu_custom_call.1} parent=1 // pred_check
      _
    $region75: #{tpu_custom_call.1} parent=1 // pred_check_branch
      %146 = sbr.rel (0) target = $region77
    $region76: #{tpu_custom_call.1} parent=1 // pred_region
      %147 = dma.done [#allocation9], 1024
    $region77: #{tpu_custom_call.1} parent=1 // pred_fallthru
      _
    // Predicated region
    $region78: #{tpu_custom_call.1} parent=1 // pred_check
      _
    $region79: #{tpu_custom_call.1} parent=1 // pred_check_branch
      %149 = sbr.rel (0) target = $region81
    $region80: #{tpu_custom_call.1} parent=1 // pred_region
      %150 = dma.done [#allocation9], 1024
    $region81: #{tpu_custom_call.1} parent=1 // pred_fallthru
      _
    // Predicated region
    $region82: #{tpu_custom_call.1} parent=1 // pred_check
      _
    $region83: #{tpu_custom_call.1} parent=1 // pred_check_branch
      %152 = sbr.rel (0) target = $region85
    $region84: #{tpu_custom_call.1} parent=1 // pred_region
      %153 = dma.done [#allocation12], 2048
    $region85: #{tpu_custom_call.1} parent=1 // pred_fallthru
      _
    // Predicated region
    $region86: #{tpu_custom_call.1} parent=1 // pred_check
      _
    $region87: #{tpu_custom_call.1} parent=1 // pred_check_branch
      %155 = sbr.rel (0) target = $region89
    $region88: #{tpu_custom_call.1} parent=1 // pred_region
      %156 = dma.done [#allocation12], 1024
    $region89: #{tpu_custom_call.1} parent=1 // pred_fallthru
      _
    // Predicated region
    $region90: #{tpu_custom_call.1} parent=1 // pred_check
      _
    $region91: #{tpu_custom_call.1} parent=1 // pred_check_branch
      %158 = sbr.rel (0) target = $region93
    $region92: #{tpu_custom_call.1} parent=1 // pred_region
      %159 = dma.done [#allocation15], 1024
    $region93: #{tpu_custom_call.1} parent=1 // pred_fallthru
      _
    %v161 = vld [vmem:[#allocation2] sm:$0xf]
    %v162 = vld [vmem:[#allocation2 + $0x4] sm:$0xf]
    %v163 = vld [vmem:[#allocation5] sm:$0xf]
    %v164 = vld [vmem:[#allocation5 + $0x4] sm:$0xf]
    %v165 = vld [vmem:[#allocation5 + $0x8] sm:$0xf]
    %v166 = vld [vmem:[#allocation5 + $0xc] sm:$0xf]
    %v167 = vld [vmem:[#allocation5 + $0x10] sm:$0xf]
    %v168 = vld [vmem:[#allocation5 + $0x14] sm:$0xf]
    %v169 = vld [vmem:[#allocation5 + $0x18] sm:$0xf]
    %v170 = vld [vmem:[#allocation5 + $0x1c] sm:$0xf]
    %v171 = vld [vmem:[#allocation5 + $0x20] sm:$0xf]
    %v172 = vld [vmem:[#allocation5 + $0x24] sm:$0xf]
    %v173 = vld [vmem:[#allocation5 + $0x28] sm:$0xf]
    %v174 = vld [vmem:[#allocation5 + $0x2c] sm:$0xf]
    %v175 = vld [vmem:[#allocation5 + $0x30] sm:$0xf]
    %v176 = vld [vmem:[#allocation5 + $0x34] sm:$0xf]
    %v177 = vld [vmem:[#allocation5 + $0x38] sm:$0xf]
    %v178 = vld [vmem:[#allocation5 + $0x3c] sm:$0xf]
    %v179 = vld [vmem:[%s2] sm:$0x1]
    %v181 = vlaneseq
    %v182 = vshrl.u32 %v181, 7
    %v183 = vsub.s32 0, %v182
    %v184 = vrot.slane %v179, %v183
    %v188 = vunpack.c.l.b16 %v161
    %v189 = vunpack.c.l.b16 %v162
    %v190 = vpack.c.b16 %v189, %v188
    %v208 = vunpack.c.l.b16 %v163
    %v209 = vunpack.c.l.b16 %v164
    %v210 = vunpack.c.l.b16 %v165
    %v211 = vunpack.c.l.b16 %v166
    %v212 = vunpack.c.l.b16 %v167
    %v213 = vunpack.c.l.b16 %v168
    %v214 = vunpack.c.l.b16 %v169
    %v215 = vunpack.c.l.b16 %v170
    %v216 = vunpack.c.l.b16 %v171
    %v217 = vunpack.c.l.b16 %v172
    %v218 = vunpack.c.l.b16 %v173
    %v219 = vunpack.c.l.b16 %v174
    %v220 = vunpack.c.l.b16 %v175
    %v221 = vunpack.c.l.b16 %v176
    %v222 = vunpack.c.l.b16 %v177
    %v223 = vunpack.c.l.b16 %v178
    %v224 = vpack.c.b16 %v209, %v208
    %v225 = vpack.c.b16 %v211, %v210
    %v226 = vpack.c.b16 %v213, %v212
    %v227 = vpack.c.b16 %v215, %v214
    %v228 = vpack.c.b16 %v217, %v216
    %v229 = vpack.c.b16 %v219, %v218
    %v230 = vpack.c.b16 %v221, %v220
    %v231 = vpack.c.b16 %v223, %v222
    %240 = vmatprep.subr.bf16.mxu0 0
    %241 = vmatpush1.bf16.msra.mxu0 %v224
    %242 = vmatprep.subr.bf16.mxu0 0
    %243 = vmatpush1.bf16.msra.mxu0 %v225
    %244 = vmatprep.subr.bf16.mxu0 0
    %245 = vmatpush1.bf16.msra.mxu0 %v226
    %246 = vmatprep.subr.bf16.mxu0 0
    %247 = vmatpush1.bf16.msra.mxu0 %v227
    %248 = vmatprep.subr.bf16.mxu0 0
    %249 = vmatpush1.bf16.msra.mxu0 %v228
    %250 = vmatprep.subr.bf16.mxu0 0
    %251 = vmatpush1.bf16.msra.mxu0 %v229
    %252 = vmatprep.subr.bf16.mxu0 0
    %253 = vmatpush1.bf16.msra.mxu0 %v230
    %254 = vmatprep.subr.bf16.mxu0 0
    %255 = vmatpush1.bf16.msra.mxu0 %v231
    %256 = vmatprep.subr.bf16.mxu0 0
    %257 = vmatpush1.bf16.msra.mxu0 0
    %258 = vmatprep.subr.bf16.mxu0 0
    %259 = vmatpush1.bf16.msra.mxu0 0
    %260 = vmatprep.subr.bf16.mxu0 0
    %261 = vmatpush1.bf16.msra.mxu0 0
    %262 = vmatprep.subr.bf16.mxu0 0
    %263 = vmatpush1.bf16.msra.mxu0 0
    %264 = vmatprep.subr.bf16.mxu0 0
    %265 = vmatpush1.bf16.msra.mxu0 0
    %266 = vmatprep.subr.bf16.mxu0 0
    %267 = vmatpush1.bf16.msra.mxu0 0
    %268 = vmatprep.subr.bf16.mxu0 0
    %269 = vmatpush1.bf16.msra.mxu0 0
    %270 = vmatprep.subr.bf16.mxu0 0
    %271 = vmatpush1.bf16.msra.mxu0 0
    %272 = vmatprep.mubr.bf16.mxu0 0
    %273 = vmatmul.mubr.bf16.gmra.mrb[0].mxu0 %v190
    %v274 = vpop.f32.mrb[0].mxu0
    %v275 = vadd.f32 %v184, %v274
    %v276 = vpop.f32.mrb[0].mxu0
    %v277 = vpop.f32.mrb[0].mxu0
    %v278 = vadd.f32 %v184, %v277
    %v279 = vpop.f32.mrb[0].mxu0
    %280 = vdwg.mxu0
    %v281 = vmax.f32 %v275, 0.0
    %v282 = vmax.f32 %v278, 0.0
    %v283 = vpack.c.bf16 %v282, %v281
    %v284 = vld [vmem:[#allocation7] sm:$0xf]
    %v285 = vld [vmem:[#allocation7 + $0x4] sm:$0xf]
    %v286 = vld [vmem:[#allocation7 + $0x8] sm:$0xf]
    %v287 = vld [vmem:[#allocation7 + $0xc] sm:$0xf]
    %v288 = vld [vmem:[#allocation7 + $0x10] sm:$0xf]
    %v289 = vld [vmem:[#allocation7 + $0x14] sm:$0xf]
    %v290 = vld [vmem:[#allocation7 + $0x18] sm:$0xf]
    %v291 = vld [vmem:[#allocation7 + $0x1c] sm:$0xf]
    %v292 = vld [vmem:[#allocation7 + $0x20] sm:$0xf]
    %v293 = vld [vmem:[#allocation7 + $0x24] sm:$0xf]
    %v294 = vld [vmem:[#allocation7 + $0x28] sm:$0xf]
    %v295 = vld [vmem:[#allocation7 + $0x2c] sm:$0xf]
    %v296 = vld [vmem:[#allocation7 + $0x30] sm:$0xf]
    %v297 = vld [vmem:[#allocation7 + $0x34] sm:$0xf]
    %v298 = vld [vmem:[#allocation7 + $0x38] sm:$0xf]
    %v299 = vld [vmem:[#allocation7 + $0x3c] sm:$0xf]
    %v300 = vld [vmem:[%s4] sm:$0x1]
    %v302 = vlaneseq
    %v303 = vshrl.u32 %v302, 7
    %v304 = vsub.s32 0, %v303
    %v305 = vrot.slane %v300, %v304
    %v323 = vunpack.c.l.b16 %v284
    %v324 = vunpack.c.l.b16 %v285
    %v325 = vunpack.c.l.b16 %v286
    %v326 = vunpack.c.l.b16 %v287
    %v327 = vunpack.c.l.b16 %v288
    %v328 = vunpack.c.l.b16 %v289
    %v329 = vunpack.c.l.b16 %v290
    %v330 = vunpack.c.l.b16 %v291
    %v331 = vunpack.c.l.b16 %v292
    %v332 = vunpack.c.l.b16 %v293
    %v333 = vunpack.c.l.b16 %v294
    %v334 = vunpack.c.l.b16 %v295
    %v335 = vunpack.c.l.b16 %v296
    %v336 = vunpack.c.l.b16 %v297
    %v337 = vunpack.c.l.b16 %v298
    %v338 = vunpack.c.l.b16 %v299
    %v339 = vpack.c.b16 %v324, %v323
    %v340 = vpack.c.b16 %v326, %v325
    %v341 = vpack.c.b16 %v328, %v327
    %v342 = vpack.c.b16 %v330, %v329
    %v343 = vpack.c.b16 %v332, %v331
    %v344 = vpack.c.b16 %v334, %v333
    %v345 = vpack.c.b16 %v336, %v335
    %v346 = vpack.c.b16 %v338, %v337
    %355 = vmatprep.subr.bf16.mxu0 0
    %356 = vmatpush1.bf16.msra.mxu0 %v339
    %357 = vmatprep.subr.bf16.mxu0 0
    %358 = vmatpush1.bf16.msra.mxu0 %v340
    %359 = vmatprep.subr.bf16.mxu0 0
    %360 = vmatpush1.bf16.msra.mxu0 %v341
    %361 = vmatprep.subr.bf16.mxu0 0
    %362 = vmatpush1.bf16.msra.mxu0 %v342
    %363 = vmatprep.subr.bf16.mxu0 0
    %364 = vmatpush1.bf16.msra.mxu0 %v343
    %365 = vmatprep.subr.bf16.mxu0 0
    %366 = vmatpush1.bf16.msra.mxu0 %v344
    %367 = vmatprep.subr.bf16.mxu0 0
    %368 = vmatpush1.bf16.msra.mxu0 %v345
    %369 = vmatprep.subr.bf16.mxu0 0
    %370 = vmatpush1.bf16.msra.mxu0 %v346
    %371 = vmatprep.subr.bf16.mxu0 0
    %372 = vmatpush1.bf16.msra.mxu0 0
    %373 = vmatprep.subr.bf16.mxu0 0
    %374 = vmatpush1.bf16.msra.mxu0 0
    %375 = vmatprep.subr.bf16.mxu0 0
    %376 = vmatpush1.bf16.msra.mxu0 0
    %377 = vmatprep.subr.bf16.mxu0 0
    %378 = vmatpush1.bf16.msra.mxu0 0
    %379 = vmatprep.subr.bf16.mxu0 0
    %380 = vmatpush1.bf16.msra.mxu0 0
    %381 = vmatprep.subr.bf16.mxu0 0
    %382 = vmatpush1.bf16.msra.mxu0 0
    %383 = vmatprep.subr.bf16.mxu0 0
    %384 = vmatpush1.bf16.msra.mxu0 0
    %385 = vmatprep.subr.bf16.mxu0 0
    %386 = vmatpush1.bf16.msra.mxu0 0
    %387 = vmatprep.mubr.bf16.mxu0 0
    %388 = vmatmul.mubr.bf16.gmra.mrb[0].mxu0 %v283
    %v389 = vpop.f32.mrb[0].mxu0
    %v390 = vadd.f32 %v305, %v389
    %v391 = vpop.f32.mrb[0].mxu0
    %v392 = vpop.f32.mrb[0].mxu0
    %v393 = vadd.f32 %v305, %v392
    %v394 = vpop.f32.mrb[0].mxu0
    %395 = vdwg.mxu0
    %v396 = vmax.f32 %v390, 0.0
    %v397 = vmax.f32 %v393, 0.0
    %v398 = vpack.c.bf16 %v397, %v396
    %v399 = vld [vmem:[#allocation8] sm:$0xf]
    %v400 = vld [vmem:[#allocation8 + $0x4] sm:$0xf]
    %v401 = vld [vmem:[#allocation8 + $0x8] sm:$0xf]
    %v402 = vld [vmem:[#allocation8 + $0xc] sm:$0xf]
    %v403 = vld [vmem:[#allocation8 + $0x10] sm:$0xf]
    %v404 = vld [vmem:[#allocation8 + $0x14] sm:$0xf]
    %v405 = vld [vmem:[#allocation8 + $0x18] sm:$0xf]
    %v406 = vld [vmem:[#allocation8 + $0x1c] sm:$0xf]
    %v407 = vld [vmem:[#allocation8 + $0x20] sm:$0xf]
    %v408 = vld [vmem:[#allocation8 + $0x24] sm:$0xf]
    %v409 = vld [vmem:[#allocation8 + $0x28] sm:$0xf]
    %v410 = vld [vmem:[#allocation8 + $0x2c] sm:$0xf]
    %v411 = vld [vmem:[#allocation8 + $0x30] sm:$0xf]
    %v412 = vld [vmem:[#allocation8 + $0x34] sm:$0xf]
    %v413 = vld [vmem:[#allocation8 + $0x38] sm:$0xf]
    %v414 = vld [vmem:[#allocation8 + $0x3c] sm:$0xf]
    %v415 = vld [vmem:[%s6] sm:$0x1]
    %v417 = vlaneseq
    %v418 = vshrl.u32 %v417, 7
    %v419 = vsub.s32 0, %v418
    %v420 = vrot.slane %v415, %v419
    %v438 = vunpack.c.l.b16 %v399
    %v439 = vunpack.c.l.b16 %v400
    %v440 = vunpack.c.l.b16 %v401
    %v441 = vunpack.c.l.b16 %v402
    %v442 = vunpack.c.l.b16 %v403
    %v443 = vunpack.c.l.b16 %v404
    %v444 = vunpack.c.l.b16 %v405
    %v445 = vunpack.c.l.b16 %v406
    %v446 = vunpack.c.l.b16 %v407
    %v447 = vunpack.c.l.b16 %v408
    %v448 = vunpack.c.l.b16 %v409
    %v449 = vunpack.c.l.b16 %v410
    %v450 = vunpack.c.l.b16 %v411
    %v451 = vunpack.c.l.b16 %v412
    %v452 = vunpack.c.l.b16 %v413
    %v453 = vunpack.c.l.b16 %v414
    %v454 = vpack.c.b16 %v439, %v438
    %v455 = vpack.c.b16 %v441, %v440
    %v456 = vpack.c.b16 %v443, %v442
    %v457 = vpack.c.b16 %v445, %v444
    %v458 = vpack.c.b16 %v447, %v446
    %v459 = vpack.c.b16 %v449, %v448
    %v460 = vpack.c.b16 %v451, %v450
    %v461 = vpack.c.b16 %v453, %v452
    %470 = vmatprep.subr.bf16.mxu0 0
    %471 = vmatpush1.bf16.msra.mxu0 %v454
    %472 = vmatprep.subr.bf16.mxu0 0
    %473 = vmatpush1.bf16.msra.mxu0 %v455
    %474 = vmatprep.subr.bf16.mxu0 0
    %475 = vmatpush1.bf16.msra.mxu0 %v456
    %476 = vmatprep.subr.bf16.mxu0 0
    %477 = vmatpush1.bf16.msra.mxu0 %v457
    %478 = vmatprep.subr.bf16.mxu0 0
    %479 = vmatpush1.bf16.msra.mxu0 %v458
    %480 = vmatprep.subr.bf16.mxu0 0
    %481 = vmatpush1.bf16.msra.mxu0 %v459
    %482 = vmatprep.subr.bf16.mxu0 0
    %483 = vmatpush1.bf16.msra.mxu0 %v460
    %484 = vmatprep.subr.bf16.mxu0 0
    %485 = vmatpush1.bf16.msra.mxu0 %v461
    %486 = vmatprep.subr.bf16.mxu0 0
    %487 = vmatpush1.bf16.msra.mxu0 0
    %488 = vmatprep.subr.bf16.mxu0 0
    %489 = vmatpush1.bf16.msra.mxu0 0
    %490 = vmatprep.subr.bf16.mxu0 0
    %491 = vmatpush1.bf16.msra.mxu0 0
    %492 = vmatprep.subr.bf16.mxu0 0
    %493 = vmatpush1.bf16.msra.mxu0 0
    %494 = vmatprep.subr.bf16.mxu0 0
    %495 = vmatpush1.bf16.msra.mxu0 0
    %496 = vmatprep.subr.bf16.mxu0 0
    %497 = vmatpush1.bf16.msra.mxu0 0
    %498 = vmatprep.subr.bf16.mxu0 0
    %499 = vmatpush1.bf16.msra.mxu0 0
    %500 = vmatprep.subr.bf16.mxu0 0
    %501 = vmatpush1.bf16.msra.mxu0 0
    %502 = vmatprep.mubr.bf16.mxu0 0
    %503 = vmatmul.mubr.bf16.gmra.mrb[0].mxu0 %v398
    %v504 = vpop.f32.mrb[0].mxu0
    %v505 = vadd.f32 %v420, %v504
    %v506 = vpop.f32.mrb[0].mxu0
    %v507 = vpop.f32.mrb[0].mxu0
    %v508 = vadd.f32 %v420, %v507
    %v509 = vpop.f32.mrb[0].mxu0
    %510 = vdwg.mxu0
    %v511 = vmax.f32 %v505, 0.0
    %v512 = vmax.f32 %v508, 0.0
    %v513 = vpack.c.bf16 %v512, %v511
    %v514 = vld [vmem:[#allocation10] sm:$0xf]
    %v515 = vld [vmem:[#allocation10 + $0x4] sm:$0xf]
    %v516 = vld [vmem:[#allocation10 + $0x8] sm:$0xf]
    %v517 = vld [vmem:[#allocation10 + $0xc] sm:$0xf]
    %v518 = vld [vmem:[#allocation10 + $0x10] sm:$0xf]
    %v519 = vld [vmem:[#allocation10 + $0x14] sm:$0xf]
    %v520 = vld [vmem:[#allocation10 + $0x18] sm:$0xf]
    %v521 = vld [vmem:[#allocation10 + $0x1c] sm:$0xf]
    %v522 = vld [vmem:[#allocation10 + $0x20] sm:$0xf]
    %v523 = vld [vmem:[#allocation10 + $0x24] sm:$0xf]
    %v524 = vld [vmem:[#allocation10 + $0x28] sm:$0xf]
    %v525 = vld [vmem:[#allocation10 + $0x2c] sm:$0xf]
    %v526 = vld [vmem:[#allocation10 + $0x30] sm:$0xf]
    %v527 = vld [vmem:[#allocation10 + $0x34] sm:$0xf]
    %v528 = vld [vmem:[#allocation10 + $0x38] sm:$0xf]
    %v529 = vld [vmem:[#allocation10 + $0x3c] sm:$0xf]
    %v530 = vld [vmem:[%s8] sm:$0x1]
    %v532 = vlaneseq
    %v533 = vshrl.u32 %v532, 7
    %v534 = vsub.s32 0, %v533
    %v535 = vrot.slane %v530, %v534
    %v553 = vunpack.c.l.b16 %v514
    %v554 = vunpack.c.l.b16 %v515
    %v555 = vunpack.c.l.b16 %v516
    %v556 = vunpack.c.l.b16 %v517
    %v557 = vunpack.c.l.b16 %v518
    %v558 = vunpack.c.l.b16 %v519
    %v559 = vunpack.c.l.b16 %v520
    %v560 = vunpack.c.l.b16 %v521
    %v561 = vunpack.c.l.b16 %v522
    %v562 = vunpack.c.l.b16 %v523
    %v563 = vunpack.c.l.b16 %v524
    %v564 = vunpack.c.l.b16 %v525
    %v565 = vunpack.c.l.b16 %v526
    %v566 = vunpack.c.l.b16 %v527
    %v567 = vunpack.c.l.b16 %v528
    %v568 = vunpack.c.l.b16 %v529
    %v569 = vpack.c.b16 %v554, %v553
    %v570 = vpack.c.b16 %v556, %v555
    %v571 = vpack.c.b16 %v558, %v557
    %v572 = vpack.c.b16 %v560, %v559
    %v573 = vpack.c.b16 %v562, %v561
    %v574 = vpack.c.b16 %v564, %v563
    %v575 = vpack.c.b16 %v566, %v565
    %v576 = vpack.c.b16 %v568, %v567
    %585 = vmatprep.subr.bf16.mxu0 0
    %586 = vmatpush1.bf16.msra.mxu0 %v569
    %587 = vmatprep.subr.bf16.mxu0 0
    %588 = vmatpush1.bf16.msra.mxu0 %v570
    %589 = vmatprep.subr.bf16.mxu0 0
    %590 = vmatpush1.bf16.msra.mxu0 %v571
    %591 = vmatprep.subr.bf16.mxu0 0
    %592 = vmatpush1.bf16.msra.mxu0 %v572
    %593 = vmatprep.subr.bf16.mxu0 0
    %594 = vmatpush1.bf16.msra.mxu0 %v573
    %595 = vmatprep.subr.bf16.mxu0 0
    %596 = vmatpush1.bf16.msra.mxu0 %v574
    %597 = vmatprep.subr.bf16.mxu0 0
    %598 = vmatpush1.bf16.msra.mxu0 %v575
    %599 = vmatprep.subr.bf16.mxu0 0
    %600 = vmatpush1.bf16.msra.mxu0 %v576
    %601 = vmatprep.subr.bf16.mxu0 0
    %602 = vmatpush1.bf16.msra.mxu0 0
    %603 = vmatprep.subr.bf16.mxu0 0
    %604 = vmatpush1.bf16.msra.mxu0 0
    %605 = vmatprep.subr.bf16.mxu0 0
    %606 = vmatpush1.bf16.msra.mxu0 0
    %607 = vmatprep.subr.bf16.mxu0 0
    %608 = vmatpush1.bf16.msra.mxu0 0
    %609 = vmatprep.subr.bf16.mxu0 0
    %610 = vmatpush1.bf16.msra.mxu0 0
    %611 = vmatprep.subr.bf16.mxu0 0
    %612 = vmatpush1.bf16.msra.mxu0 0
    %613 = vmatprep.subr.bf16.mxu0 0
    %614 = vmatpush1.bf16.msra.mxu0 0
    %615 = vmatprep.subr.bf16.mxu0 0
    %616 = vmatpush1.bf16.msra.mxu0 0
    %617 = vmatprep.mubr.bf16.mxu0 0
    %618 = vmatmul.mubr.bf16.gmra.mrb[0].mxu0 %v513
    %v619 = vpop.f32.mrb[0].mxu0
    %v620 = vadd.f32 %v535, %v619
    %v621 = vpop.f32.mrb[0].mxu0
    %v622 = vpop.f32.mrb[0].mxu0
    %v623 = vadd.f32 %v535, %v622
    %v624 = vpop.f32.mrb[0].mxu0
    %625 = vdwg.mxu0
    %v626 = vmax.f32 %v620, 0.0
    %v627 = vmax.f32 %v623, 0.0
    %v628 = vpack.c.bf16 %v627, %v626
    %v629 = vld [vmem:[#allocation11] sm:$0xff]
    %v630 = vld [vmem:[#allocation11 + $0x8] sm:$0xff]
    %v631 = vld [vmem:[#allocation11 + $0x10] sm:$0xff]
    %v632 = vld [vmem:[#allocation11 + $0x18] sm:$0xff]
    %v633 = vld [vmem:[#allocation11 + $0x20] sm:$0xff]
    %v634 = vld [vmem:[#allocation11 + $0x28] sm:$0xff]
    %v635 = vld [vmem:[#allocation11 + $0x30] sm:$0xff]
    %v636 = vld [vmem:[#allocation11 + $0x38] sm:$0xff]
    %v637 = vld [vmem:[#allocation11 + $0x40] sm:$0xff]
    %v638 = vld [vmem:[#allocation11 + $0x48] sm:$0xff]
    %v639 = vld [vmem:[#allocation11 + $0x50] sm:$0xff]
    %v640 = vld [vmem:[#allocation11 + $0x58] sm:$0xff]
    %v641 = vld [vmem:[#allocation11 + $0x60] sm:$0xff]
    %v642 = vld [vmem:[#allocation11 + $0x68] sm:$0xff]
    %v643 = vld [vmem:[#allocation11 + $0x70] sm:$0xff]
    %v644 = vld [vmem:[#allocation11 + $0x78] sm:$0xff]
    %v645 = vld [vmem:[%s10] sm:$0x3]
    %v647 = vlaneseq
    %v648 = vshrl.u32 %v647, 7
    %v649 = vsub.s32 0, %v648
    %v650 = vrot.slane %v645, %v649
    %v651 = vlaneseq
    %v652 = vshrl.u32 %v651, 7
    %v653 = vsub.s32 1, %v652
    %v654 = vrot.slane %v645, %v653
    %v673 = vunpack.c.l.b16 %v629
    %v674 = vunpack.c.h.b16 %v629
    %v675 = vunpack.c.l.b16 %v630
    %v676 = vunpack.c.h.b16 %v630
    %v677 = vunpack.c.l.b16 %v631
    %v678 = vunpack.c.h.b16 %v631
    %v679 = vunpack.c.l.b16 %v632
    %v680 = vunpack.c.h.b16 %v632
    %v681 = vunpack.c.l.b16 %v633
    %v682 = vunpack.c.h.b16 %v633
    %v683 = vunpack.c.l.b16 %v634
    %v684 = vunpack.c.h.b16 %v634
    %v685 = vunpack.c.l.b16 %v635
    %v686 = vunpack.c.h.b16 %v635
    %v687 = vunpack.c.l.b16 %v636
    %v688 = vunpack.c.h.b16 %v636
    %v689 = vunpack.c.l.b16 %v637
    %v690 = vunpack.c.h.b16 %v637
    %v691 = vunpack.c.l.b16 %v638
    %v692 = vunpack.c.h.b16 %v638
    %v693 = vunpack.c.l.b16 %v639
    %v694 = vunpack.c.h.b16 %v639
    %v695 = vunpack.c.l.b16 %v640
    %v696 = vunpack.c.h.b16 %v640
    %v697 = vunpack.c.l.b16 %v641
    %v698 = vunpack.c.h.b16 %v641
    %v699 = vunpack.c.l.b16 %v642
    %v700 = vunpack.c.h.b16 %v642
    %v701 = vunpack.c.l.b16 %v643
    %v702 = vunpack.c.h.b16 %v643
    %v703 = vunpack.c.l.b16 %v644
    %v704 = vunpack.c.h.b16 %v644
    %v705 = vpack.c.b16 %v675, %v673
    %v706 = vpack.c.b16 %v676, %v674
    %v707 = vpack.c.b16 %v679, %v677
    %v708 = vpack.c.b16 %v680, %v678
    %v709 = vpack.c.b16 %v683, %v681
    %v710 = vpack.c.b16 %v684, %v682
    %v711 = vpack.c.b16 %v687, %v685
    %v712 = vpack.c.b16 %v688, %v686
    %v713 = vpack.c.b16 %v691, %v689
    %v714 = vpack.c.b16 %v692, %v690
    %v715 = vpack.c.b16 %v695, %v693
    %v716 = vpack.c.b16 %v696, %v694
    %v717 = vpack.c.b16 %v699, %v697
    %v718 = vpack.c.b16 %v700, %v698
    %v719 = vpack.c.b16 %v703, %v701
    %v720 = vpack.c.b16 %v704, %v702
    %737 = vmatprep.subr.bf16.mxu0 %v706
    %738 = vmatpush1.bf16.msra.mxu0 %v705
    %739 = vmatprep.subr.bf16.mxu0 %v708
    %740 = vmatpush1.bf16.msra.mxu0 %v707
    %741 = vmatprep.subr.bf16.mxu0 %v710
    %742 = vmatpush1.bf16.msra.mxu0 %v709
    %743 = vmatprep.subr.bf16.mxu0 %v712
    %744 = vmatpush1.bf16.msra.mxu0 %v711
    %745 = vmatprep.subr.bf16.mxu0 %v714
    %746 = vmatpush1.bf16.msra.mxu0 %v713
    %747 = vmatprep.subr.bf16.mxu0 %v716
    %748 = vmatpush1.bf16.msra.mxu0 %v715
    %749 = vmatprep.subr.bf16.mxu0 %v718
    %750 = vmatpush1.bf16.msra.mxu0 %v717
    %751 = vmatprep.subr.bf16.mxu0 %v720
    %752 = vmatpush1.bf16.msra.mxu0 %v719
    %753 = vmatprep.subr.bf16.mxu0 0
    %754 = vmatpush1.bf16.msra.mxu0 0
    %755 = vmatprep.subr.bf16.mxu0 0
    %756 = vmatpush1.bf16.msra.mxu0 0
    %757 = vmatprep.subr.bf16.mxu0 0
    %758 = vmatpush1.bf16.msra.mxu0 0
    %759 = vmatprep.subr.bf16.mxu0 0
    %760 = vmatpush1.bf16.msra.mxu0 0
    %761 = vmatprep.subr.bf16.mxu0 0
    %762 = vmatpush1.bf16.msra.mxu0 0
    %763 = vmatprep.subr.bf16.mxu0 0
    %764 = vmatpush1.bf16.msra.mxu0 0
    %765 = vmatprep.subr.bf16.mxu0 0
    %766 = vmatpush1.bf16.msra.mxu0 0
    %767 = vmatprep.subr.bf16.mxu0 0
    %768 = vmatpush1.bf16.msra.mxu0 0
    %769 = vmatprep.mubr.bf16.mxu0 0
    %770 = vmatmul.mubr.bf16.gmra.mrb[0].mxu0 %v628
    %v771 = vpop.f32.mrb[0].mxu0
    %v772 = vadd.f32 %v650, %v771
    %v773 = vpop.f32.mrb[0].mxu0
    %v774 = vadd.f32 %v654, %v773
    %v775 = vpop.f32.mrb[0].mxu0
    %v776 = vadd.f32 %v650, %v775
    %v777 = vpop.f32.mrb[0].mxu0
    %v778 = vadd.f32 %v654, %v777
    %779 = vdwg.mxu0
    %v780 = vmax.f32 %v772, 0.0
    %v781 = vmax.f32 %v774, 0.0
    %v782 = vmax.f32 %v776, 0.0
    %v783 = vmax.f32 %v778, 0.0
    %v784 = vpack.c.bf16 %v782, %v780
    %v785 = vpack.c.bf16 %v783, %v781
    %v786 = vld [vmem:[#allocation13] sm:$0xf]
    %v787 = vld [vmem:[#allocation13 + $0x4] sm:$0xf]
    %v788 = vld [vmem:[#allocation13 + $0x8] sm:$0xf]
    %v789 = vld [vmem:[#allocation13 + $0xc] sm:$0xf]
    %v790 = vld [vmem:[#allocation13 + $0x10] sm:$0xf]
    %v791 = vld [vmem:[#allocation13 + $0x14] sm:$0xf]
    %v792 = vld [vmem:[#allocation13 + $0x18] sm:$0xf]
    %v793 = vld [vmem:[#allocation13 + $0x1c] sm:$0xf]
    %v794 = vld [vmem:[#allocation13 + $0x20] sm:$0xf]
    %v795 = vld [vmem:[#allocation13 + $0x24] sm:$0xf]
    %v796 = vld [vmem:[#allocation13 + $0x28] sm:$0xf]
    %v797 = vld [vmem:[#allocation13 + $0x2c] sm:$0xf]
    %v798 = vld [vmem:[#allocation13 + $0x30] sm:$0xf]
    %v799 = vld [vmem:[#allocation13 + $0x34] sm:$0xf]
    %v800 = vld [vmem:[#allocation13 + $0x38] sm:$0xf]
    %v801 = vld [vmem:[#allocation13 + $0x3c] sm:$0xf]
    %v802 = vld [vmem:[%s12] sm:$0x1]
    %v804 = vlaneseq
    %v805 = vshrl.u32 %v804, 7
    %v806 = vsub.s32 0, %v805
    %v807 = vrot.slane %v802, %v806
    %v825 = vunpack.c.l.b16 %v786
    %v826 = vunpack.c.l.b16 %v787
    %v827 = vunpack.c.l.b16 %v788
    %v828 = vunpack.c.l.b16 %v789
    %v829 = vunpack.c.l.b16 %v790
    %v830 = vunpack.c.l.b16 %v791
    %v831 = vunpack.c.l.b16 %v792
    %v832 = vunpack.c.l.b16 %v793
    %v833 = vunpack.c.l.b16 %v794
    %v834 = vunpack.c.l.b16 %v795
    %v835 = vunpack.c.l.b16 %v796
    %v836 = vunpack.c.l.b16 %v797
    %v837 = vunpack.c.l.b16 %v798
    %v838 = vunpack.c.l.b16 %v799
    %v839 = vunpack.c.l.b16 %v800
    %v840 = vunpack.c.l.b16 %v801
    %v841 = vpack.c.b16 %v826, %v825
    %v842 = vpack.c.b16 %v828, %v827
    %v843 = vpack.c.b16 %v830, %v829
    %v844 = vpack.c.b16 %v832, %v831
    %v845 = vpack.c.b16 %v834, %v833
    %v846 = vpack.c.b16 %v836, %v835
    %v847 = vpack.c.b16 %v838, %v837
    %v848 = vpack.c.b16 %v840, %v839
    %857 = vmatprep.subr.bf16.mxu0 0
    %858 = vmatpush1.bf16.msra.mxu0 %v841
    %859 = vmatprep.subr.bf16.mxu0 0
    %860 = vmatpush1.bf16.msra.mxu0 %v842
    %861 = vmatprep.subr.bf16.mxu0 0
    %862 = vmatpush1.bf16.msra.mxu0 %v843
    %863 = vmatprep.subr.bf16.mxu0 0
    %864 = vmatpush1.bf16.msra.mxu0 %v844
    %865 = vmatprep.subr.bf16.mxu0 0
    %866 = vmatpush1.bf16.msra.mxu0 %v845
    %867 = vmatprep.subr.bf16.mxu0 0
    %868 = vmatpush1.bf16.msra.mxu0 %v846
    %869 = vmatprep.subr.bf16.mxu0 0
    %870 = vmatpush1.bf16.msra.mxu0 %v847
    %871 = vmatprep.subr.bf16.mxu0 0
    %872 = vmatpush1.bf16.msra.mxu0 %v848
    %873 = vmatprep.subr.bf16.mxu0 0
    %874 = vmatpush1.bf16.msra.mxu0 0
    %875 = vmatprep.subr.bf16.mxu0 0
    %876 = vmatpush1.bf16.msra.mxu0 0
    %877 = vmatprep.subr.bf16.mxu0 0
    %878 = vmatpush1.bf16.msra.mxu0 0
    %879 = vmatprep.subr.bf16.mxu0 0
    %880 = vmatpush1.bf16.msra.mxu0 0
    %881 = vmatprep.subr.bf16.mxu0 0
    %882 = vmatpush1.bf16.msra.mxu0 0
    %883 = vmatprep.subr.bf16.mxu0 0
    %884 = vmatpush1.bf16.msra.mxu0 0
    %885 = vmatprep.subr.bf16.mxu0 0
    %886 = vmatpush1.bf16.msra.mxu0 0
    %887 = vmatprep.subr.bf16.mxu0 0
    %888 = vmatpush1.bf16.msra.mxu0 0
    %889 = vmatprep.mubr.bf16.mxu0 0
    %890 = vmatmul.mubr.bf16.gmra.mrb[0].mxu0 %v784
    %v891 = vpop.f32.mrb[0].mxu0
    %v892 = vadd.f32 %v807, %v891
    %v893 = vpop.f32.mrb[0].mxu0
    %v894 = vpop.f32.mrb[0].mxu0
    %v895 = vadd.f32 %v807, %v894
    %v896 = vpop.f32.mrb[0].mxu0
    %897 = vdwg.mxu0
    %v898 = vxor.u32 %v892, 2147483648
    %v899 = vxor.u32 %v895, 2147483648
    %v900 = vmul.f32 %v898, 1.442695
    %v901 = vpow.pop %v900
    %v902 = vmul.f32 %v899, 1.442695
    %v903 = vpow.pop %v902
    %v904 = vadd.f32 %v901, 1.0
    %v905 = vadd.f32 %v903, 1.0
    %v906 = vrcp.pop %v904
    %v907 = vmul.f32 1.0, %v906
    %v908 = vrcp.pop %v905
    %v909 = vmul.f32 1.0, %v908
    %v910 = vld [vmem:[#allocation14] sm:$0xf]
    %v911 = vld [vmem:[#allocation14 + $0x4] sm:$0xf]
    %v912 = vld [vmem:[#allocation14 + $0x8] sm:$0xf]
    %v913 = vld [vmem:[#allocation14 + $0xc] sm:$0xf]
    %v914 = vld [vmem:[#allocation14 + $0x10] sm:$0xf]
    %v915 = vld [vmem:[#allocation14 + $0x14] sm:$0xf]
    %v916 = vld [vmem:[#allocation14 + $0x18] sm:$0xf]
    %v917 = vld [vmem:[#allocation14 + $0x1c] sm:$0xf]
    %v918 = vld [vmem:[#allocation14 + $0x20] sm:$0xf]
    %v919 = vld [vmem:[#allocation14 + $0x24] sm:$0xf]
    %v920 = vld [vmem:[#allocation14 + $0x28] sm:$0xf]
    %v921 = vld [vmem:[#allocation14 + $0x2c] sm:$0xf]
    %v922 = vld [vmem:[#allocation14 + $0x30] sm:$0xf]
    %v923 = vld [vmem:[#allocation14 + $0x34] sm:$0xf]
    %v924 = vld [vmem:[#allocation14 + $0x38] sm:$0xf]
    %v925 = vld [vmem:[#allocation14 + $0x3c] sm:$0xf]
    %v926 = vld [vmem:[%s14] sm:$0x1]
    %v928 = vlaneseq
    %v929 = vshrl.u32 %v928, 7
    %v930 = vsub.s32 0, %v929
    %v931 = vrot.slane %v926, %v930
    %v949 = vunpack.c.l.b16 %v910
    %v950 = vunpack.c.l.b16 %v911
    %v951 = vunpack.c.l.b16 %v912
    %v952 = vunpack.c.l.b16 %v913
    %v953 = vunpack.c.l.b16 %v914
    %v954 = vunpack.c.l.b16 %v915
    %v955 = vunpack.c.l.b16 %v916
    %v956 = vunpack.c.l.b16 %v917
    %v957 = vunpack.c.l.b16 %v918
    %v958 = vunpack.c.l.b16 %v919
    %v959 = vunpack.c.l.b16 %v920
    %v960 = vunpack.c.l.b16 %v921
    %v961 = vunpack.c.l.b16 %v922
    %v962 = vunpack.c.l.b16 %v923
    %v963 = vunpack.c.l.b16 %v924
    %v964 = vunpack.c.l.b16 %v925
    %v965 = vpack.c.b16 %v950, %v949
    %v966 = vpack.c.b16 %v952, %v951
    %v967 = vpack.c.b16 %v954, %v953
    %v968 = vpack.c.b16 %v956, %v955
    %v969 = vpack.c.b16 %v958, %v957
    %v970 = vpack.c.b16 %v960, %v959
    %v971 = vpack.c.b16 %v962, %v961
    %v972 = vpack.c.b16 %v964, %v963
    %981 = vmatprep.subr.bf16.mxu0 0
    %982 = vmatpush1.bf16.msra.mxu0 %v965
    %983 = vmatprep.subr.bf16.mxu0 0
    %984 = vmatpush1.bf16.msra.mxu0 %v966
    %985 = vmatprep.subr.bf16.mxu0 0
    %986 = vmatpush1.bf16.msra.mxu0 %v967
    %987 = vmatprep.subr.bf16.mxu0 0
    %988 = vmatpush1.bf16.msra.mxu0 %v968
    %989 = vmatprep.subr.bf16.mxu0 0
    %990 = vmatpush1.bf16.msra.mxu0 %v969
    %991 = vmatprep.subr.bf16.mxu0 0
    %992 = vmatpush1.bf16.msra.mxu0 %v970
    %993 = vmatprep.subr.bf16.mxu0 0
    %994 = vmatpush1.bf16.msra.mxu0 %v971
    %995 = vmatprep.subr.bf16.mxu0 0
    %996 = vmatpush1.bf16.msra.mxu0 %v972
    %997 = vmatprep.subr.bf16.mxu0 0
    %998 = vmatpush1.bf16.msra.mxu0 0
    %999 = vmatprep.subr.bf16.mxu0 0
    %1000 = vmatpush1.bf16.msra.mxu0 0
    %1001 = vmatprep.subr.bf16.mxu0 0
    %1002 = vmatpush1.bf16.msra.mxu0 0
    %1003 = vmatprep.subr.bf16.mxu0 0
    %1004 = vmatpush1.bf16.msra.mxu0 0
    %1005 = vmatprep.subr.bf16.mxu0 0
    %1006 = vmatpush1.bf16.msra.mxu0 0
    %1007 = vmatprep.subr.bf16.mxu0 0
    %1008 = vmatpush1.bf16.msra.mxu0 0
    %1009 = vmatprep.subr.bf16.mxu0 0
    %1010 = vmatpush1.bf16.msra.mxu0 0
    %1011 = vmatprep.subr.bf16.mxu0 0
    %1012 = vmatpush1.bf16.msra.mxu0 0
    %1013 = vmatprep.mubr.bf16.mxu0 0
    %1014 = vmatmul.mubr.bf16.gmra.mrb[0].mxu0 %v785
    %v1015 = vpop.f32.mrb[0].mxu0
    %v1016 = vadd.f32 %v931, %v1015
    %v1017 = vpop.f32.mrb[0].mxu0
    %v1018 = vpop.f32.mrb[0].mxu0
    %v1019 = vadd.f32 %v931, %v1018
    %v1020 = vpop.f32.mrb[0].mxu0
    %1021 = vdwg.mxu0
    %v1022 = vpack.c.bf16 %v909, %v907
    %v1024 = vunpack.c.l.b16 %v1022
    %v1025 = vunpack.c.h.b16 %v1022
    %v1026 = vpack.c.b16 %v1024, %v1024
    %v1027 = vpack.c.b16 %v1025, %v1025
    %1030 = vst [vmem:[#allocation16] sm:$0xf] %v1026
    %1031 = vst [vmem:[#allocation16 + $0x8] sm:$0xf] %v1027
    %v1032 = vpack.c.bf16 %v1019, %v1016
    %v1034 = vunpack.c.l.b16 %v1032
    %v1035 = vunpack.c.h.b16 %v1032
    %v1036 = vpack.c.b16 %v1034, %v1034
    %v1037 = vpack.c.b16 %v1035, %v1035
    %1040 = vst [vmem:[#allocation16 + $0x4] sm:$0xf] %v1036
    %1041 = vst [vmem:[#allocation16 + $0xc] sm:$0xf] %v1037
    // Predicated region
    $region94: #{tpu_custom_call.1} parent=1 // pred_check
      _
    $region95: #{tpu_custom_call.1} parent=1 // pred_check_branch
      %1043 = sbr.rel (0) target = $region97
    $region96: #{tpu_custom_call.1} parent=1 // pred_region
      %s1045 = ssub.s32 256, 256
      %1046 = vsyncadd [#allocation4], %s1045
      %s1047 = sshll.u32 [#allocation16], 4
      %s1048 = int_to_ptr.vmem [resolvable:$true] %s1047
      %1053 = dma.vmem_to_hbm [thread:$0]  %s1048, 256, %s15, [#allocation4], 128, 128, 8
    $region97: #{tpu_custom_call.1} parent=1 // pred_fallthru
      _
    // Predicated region
    $region98: #{tpu_custom_call.1} parent=1 // pred_check
      _
    $region99: #{tpu_custom_call.1} parent=1 // pred_check_branch
      %1055 = sbr.rel (0) target = $region101
    $region100: #{tpu_custom_call.1} parent=1 // pred_region
      %1056 = dma.done [#allocation4], 256
    $region101: #{tpu_custom_call.1} parent=1 // pred_fallthru
      _
    %1057 = vsyncpa [#allocation3], 1
    %1058 = vsyncpa [#allocation6], 1
    %1059 = vsyncpa [#allocation9], 1
    %1060 = vsyncpa [#allocation12], 1
    %1061 = vsyncpa [#allocation15], 1
    %1062 = vsyncpa [#allocation4], 1

</llo_original>
